<compile_context>
chip_gen: v7x
topology: tpu7x:2x2x1
jax: 0.10.0
libtpu: 0.0.40
codegen_flags: <defaults>
</compile_context>

<pallas_src>
import jax
import jax.numpy as jnp
from jax import lax
from jax.experimental import pallas as pl
from jax.experimental.pallas import tpu as pltpu


def gru_kernel(x_ref, wih_ref, whh_ref, bx_ref, bhn_ref, o_ref, h_ref, gx_ref):
    """One (batch-tile, time-tile) grid step of the GRU recurrence.

    x_ref   : (T_TILE*B_TILE, E)   embedded inputs for this tile (time-major)
    wih_ref : (E, 3*Hp)            input->hidden weights (gate slabs r,z,n)
    whh_ref : (Hp, 3*Hp)           hidden->hidden weights (zero-padded)
    bx_ref  : (1, 3*Hp)            folded biases [bi_r+bh_r, bi_z+bh_z, bi_n]
    bhn_ref : (1, Hp)              hidden bias of the n gate
    o_ref   : (B_TILE, Hp)         final hidden state for this batch tile
    h_ref   : (B_TILE, Hp)         persistent hidden state (VMEM scratch, f32)
    gx_ref  : (T_TILE*B_TILE, 3Hp) precomputed input projection (VMEM scratch)
    """
    t = pl.program_id(1)
    n_t = pl.num_programs(1)
    TB, _ = x_ref.shape
    B_TILE, Hp = o_ref.shape
    T_TILE = TB // B_TILE

    # initHidden(): zeros, once per batch tile (t == 0).
    @pl.when(t == 0)
    def _():
        h_ref[...] = jnp.zeros_like(h_ref)

    # Input projection for this time tile: off the serial critical path, one
    # well-shaped MXU matmul (bf16 inputs on v6e/v7x, f32 accumulate).
    gx_ref[...] = (
        jnp.dot(x_ref[...], wih_ref[...], preferred_element_type=jnp.float32)
        + bx_ref[...]
    )

    whh = whh_ref[...]
    bhn = jnp.broadcast_to(bhn_ref[...], (B_TILE, Hp))  # hoisted out of loop

    def step(i, h):
        off = pl.multiple_of(i * B_TILE, B_TILE)
        gx = gx_ref[pl.ds(off, B_TILE), :]                           # (B, 3Hp)
        gh = jnp.dot(h.astype(whh.dtype), whh,
                     preferred_element_type=jnp.float32)             # (B, 3Hp)
        # Gate slabs are lane-aligned (Hp is a multiple of 128).
        r = jax.nn.sigmoid(gx[:, 0:Hp] + gh[:, 0:Hp])
        z = jax.nn.sigmoid(gx[:, Hp:2 * Hp] + gh[:, Hp:2 * Hp])
        n = jnp.tanh(gx[:, 2 * Hp:] + r * (gh[:, 2 * Hp:] + bhn))
        return n + z * (h - n)                                       # (1-z)n+zh

    # Only the small T_TILE loop is unrolled (modest unroll, not full T).
    h_ref[...] = lax.fori_loop(0, T_TILE, step, h_ref[...], unroll=True)

    @pl.when(t == n_t - 1)
    def _():
        o_ref[...] = h_ref[...].astype(o_ref.dtype)


def _prep_gru_params(w_ih, w_hh, b_ih, b_hh, H, Hp, mxu_dtype):
    """One-time parameter prep: transpose, gate-slab pad, fold biases."""
    def pad_cols(w):                                   # (X, H) -> (X, Hp)
        return jnp.pad(w, ((0, 0), (0, Hp - H)))

    def split_gates_T(w):                              # (3H, X) -> 3 x (X, H)
        return w[:H].T, w[H:2 * H].T, w[2 * H:].T

    wih_r, wih_z, wih_n = split_gates_T(w_ih)          # each (E, H)
    whh_r, whh_z, whh_n = split_gates_T(w_hh)          # each (H, H)
    wih_p = jnp.concatenate(
        [pad_cols(wih_r), pad_cols(wih_z), pad_cols(wih_n)], axis=1)   # (E,3Hp)
    whh_p = jnp.concatenate(
        [pad_cols(whh_r), pad_cols(whh_z), pad_cols(whh_n)], axis=1)   # (H,3Hp)
    whh_p = jnp.pad(whh_p, ((0, Hp - H), (0, 0)))                      # (Hp,3Hp)

    def pad_vec(v):                                    # (H,) -> (Hp,)
        return jnp.pad(v, (0, Hp - H))

    bih_r, bih_z, bih_n = b_ih[:H], b_ih[H:2 * H], b_ih[2 * H:]
    bhh_r, bhh_z, bhh_n = b_hh[:H], b_hh[H:2 * H], b_hh[2 * H:]
    # r/z biases fold into the projection; only b_hh_n stays inside r*(...).
    bx = jnp.concatenate([pad_vec(bih_r + bhh_r),
                          pad_vec(bih_z + bhh_z),
                          pad_vec(bih_n)]).reshape(1, 3 * Hp)
    bhn = pad_vec(bhh_n).reshape(1, Hp)
    return (wih_p.astype(mxu_dtype), whh_p.astype(mxu_dtype),
            bx.astype(jnp.float32), bhn.astype(jnp.float32))


def encoder_rnn_forward(tokens, embedding, w_ih, w_hh, b_ih, b_hh, *,
                        t_tile=4, b_tile=8, mxu_dtype=jnp.bfloat16):
    """Mirrors EncoderRNN.forward: returns hidden of shape (1, B, H)."""
    tokens = tokens.astype(jnp.int32)              # TPU has no native int64 path
    B, T = tokens.shape
    E = embedding.shape[1]
    H = w_hh.shape[1]
    Hp = ((H + 127) // 128) * 128                  # lane-align each gate slab

    if B % b_tile != 0:
        b_tile = B
    if T % t_tile != 0:
        t_tile = T
    nb = B // b_tile
    nt = T // t_tile

    # Embedding gather directly in time-major order (no transpose of the
    # gathered activations), then split batch tiles and flatten (time, batch)
    # so each grid block is a plain 2-D (T_TILE*B_TILE, E) slab.
    x_tbe = jnp.take(embedding, tokens.T, axis=0)                    # (T, B, E)
    x_r = x_tbe.reshape(T, nb, b_tile, E).transpose(1, 0, 2, 3)      # (nb,T,bt,E)
    x_r = x_r.reshape(nb, T * b_tile, E).astype(mxu_dtype)

    wih_p, whh_p, bx, bhn = _prep_gru_params(w_ih, w_hh, b_ih, b_hh, H, Hp,
                                             mxu_dtype)

    out = pl.pallas_call(
        gru_kernel,
        out_shape=jax.ShapeDtypeStruct((nb, b_tile, Hp), jnp.float32),
        grid=(nb, nt),
        in_specs=[
            pl.BlockSpec((None, t_tile * b_tile, E), lambda b, t: (b, t, 0)),
            pl.BlockSpec((E, 3 * Hp), lambda b, t: (0, 0)),
            pl.BlockSpec((Hp, 3 * Hp), lambda b, t: (0, 0)),
            pl.BlockSpec((1, 3 * Hp), lambda b, t: (0, 0)),
            pl.BlockSpec((1, Hp), lambda b, t: (0, 0)),
        ],
        out_specs=pl.BlockSpec((None, b_tile, Hp), lambda b, t: (b, 0, 0)),
        scratch_shapes=[
            pltpu.VMEM((b_tile, Hp), jnp.float32),                # persistent h
            pltpu.VMEM((t_tile * b_tile, 3 * Hp), jnp.float32),   # per-tile gx
        ],
        compiler_params=pltpu.CompilerParams(
            dimension_semantics=("parallel", "arbitrary"),
            vmem_limit_bytes=48 * 1024 * 1024),
    )(x_r, wih_p, whh_p, bx, bhn)

    # Padded hidden columns stay exactly zero (zero weights/bias, zero h0),
    # so slicing off the padding recovers the true hidden state.
    h_pad = out.reshape(B, Hp)
    return h_pad[:, :H].reshape(1, B, H)


def gru_reference(tokens, embedding, w_ih, w_hh, b_ih, b_hh):
    """Pure-JAX reference matching torch.nn.GRU semantics (gate order r,z,n)."""
    B, T = tokens.shape
    H = w_hh.shape[1]
    x = jnp.transpose(jnp.take(embedding, tokens, axis=0), (1, 0, 2))  # (T,B,E)
    h = jnp.zeros((B, H), dtype=jnp.float32)

    def step(h, x_t):
        gx = x_t @ w_ih.T + b_ih
        gh = h @ w_hh.T + b_hh
        r = jax.nn.sigmoid(gx[:, :H] + gh[:, :H])
        z = jax.nn.sigmoid(gx[:, H:2 * H] + gh[:, H:2 * H])
        n = jnp.tanh(gx[:, 2 * H:] + r * gh[:, 2 * H:])
        return (1.0 - z) * n + z * h, None

    h, _ = lax.scan(step, h, x)
    return h.reshape(1, B, H)


if __name__ == "__main__":
    # Small deterministic config consistent with EncoderRNN(vocab, embed, hidden).
    vocab_size, embed_size, hidden_size = 50, 32, 32
    B, T = 16, 8   # 2 batch tiles x 2 time tiles -> exercises the 2-D grid

    key = jax.random.PRNGKey(0)
    k_tok, k_emb, k_wih, k_whh, k_bih, k_bhh = jax.random.split(key, 6)

    tokens = jax.random.randint(k_tok, (B, T), 0, vocab_size, dtype=jnp.int32)
    embedding = jax.random.normal(k_emb, (vocab_size, embed_size), jnp.float32)
    scale = 1.0 / (hidden_size ** 0.5)
    w_ih = jax.random.uniform(k_wih, (3 * hidden_size, embed_size), jnp.float32,
                              -scale, scale)
    w_hh = jax.random.uniform(k_whh, (3 * hidden_size, hidden_size), jnp.float32,
                              -scale, scale)
    b_ih = jax.random.uniform(k_bih, (3 * hidden_size,), jnp.float32, -scale, scale)
    b_hh = jax.random.uniform(k_bhh, (3 * hidden_size,), jnp.float32, -scale, scale)

    ref = gru_reference(tokens, embedding, w_ih, w_hh, b_ih, b_hh)

    # f32 MXU path: tight numerical validation of the algorithm.
    h_f32 = encoder_rnn_forward(tokens, embedding, w_ih, w_hh, b_ih, b_hh,
                                mxu_dtype=jnp.float32)
    h_f32 = jax.block_until_ready(h_f32)
    assert h_f32.shape == (1, B, hidden_size)
    assert jnp.allclose(h_f32, ref, atol=1e-5, rtol=1e-5), "f32 mismatch vs ref"

    # bf16 MXU path (v6e/v7x perf config, f32 accumulate): looser tolerance.
    h_bf16 = encoder_rnn_forward(tokens, embedding, w_ih, w_hh, b_ih, b_hh,
                                 mxu_dtype=jnp.bfloat16)
    h_bf16 = jax.block_until_ready(h_bf16)
    assert h_bf16.shape == (1, B, hidden_size)
    assert jnp.allclose(h_bf16, ref, atol=2e-2, rtol=2e-2), "bf16 mismatch vs ref"

    print("KERNEL_OK")
</pallas_src>

<mosaic_0001>
module attributes {stable_mosaic.version = 11 : i64} {
  func.func @gru_kernel(%arg0: i32, %arg1: i32, %arg2: memref<1x32x32xf32, #tpu.memory_space<vmem>>, %arg3: memref<32x384xf32, #tpu.memory_space<vmem>>, %arg4: memref<128x384xf32, #tpu.memory_space<vmem>>, %arg5: memref<1x384xf32, #tpu.memory_space<vmem>>, %arg6: memref<1x128xf32, #tpu.memory_space<vmem>>, %arg7: memref<1x8x128xf32, #tpu.memory_space<vmem>>, %arg8: memref<8x128xf32, #tpu.memory_space<vmem>>, %arg9: memref<32x384xf32, #tpu.memory_space<vmem>>) attributes {dimension_semantics = [#tpu.dimension_semantics<parallel>, #tpu.dimension_semantics<arbitrary>], iteration_bounds = array<i64: 2, 2>, scalar_prefetch = 0 : i64, scratch_operands = 2 : i64, tpu.core_type = #tpu.core_type<tc>, window_params = [{transform_indices = @transform_0, window_bounds = array<i64: 1, 32, 32>}, {pipeline_mode = #tpu.pipeline_mode<synchronous>, transform_indices = @transform_1, window_bounds = array<i64: 32, 384>}, {pipeline_mode = #tpu.pipeline_mode<synchronous>, transform_indices = @transform_2, window_bounds = array<i64: 128, 384>}, {pipeline_mode = #tpu.pipeline_mode<synchronous>, transform_indices = @transform_3, window_bounds = array<i64: 1, 384>}, {pipeline_mode = #tpu.pipeline_mode<synchronous>, transform_indices = @transform_4, window_bounds = array<i64: 1, 128>}, {transform_indices = @transform_5, window_bounds = array<i64: 1, 8, 128>}]} {
    %c0_i32 = arith.constant 0 : i32
    %0 = arith.cmpi eq, %arg1, %c0_i32 : i32
    %1 = arith.extui %0 : i1 to i32
    %c0_i32_0 = arith.constant 0 : i32
    %2 = arith.cmpi ne, %1, %c0_i32_0 : i32
    scf.if %2 {
      %cst_39 = arith.constant 0.000000e+00 : f32
      %140 = vector.broadcast %cst_39 : f32 to vector<8x128xf32>
      %c0_40 = arith.constant 0 : index
      %c0_41 = arith.constant 0 : index
      %141 = vector.load %arg8[%c0_40, %c0_41] : memref<8x128xf32, #tpu.memory_space<vmem>>, vector<8x128xf32>
      tpu.vector_store %arg8[%c0_40, %c0_41], %140 {strides = array<i32>} : memref<8x128xf32, #tpu.memory_space<vmem>>, vector<8x128xf32>,
    } else {
    }
    %c0 = arith.constant 0 : index
    %c0_1 = arith.constant 0 : index
    %c0_2 = arith.constant 0 : index
    %3 = vector.load %arg2[%c0, %c0_1, %c0_2] : memref<1x32x32xf32, #tpu.memory_space<vmem>>, vector<1x32x32xf32>
    %4 = vector.shape_cast %3 : vector<1x32x32xf32> to vector<32x32xf32>
    %c0_3 = arith.constant 0 : index
    %c0_4 = arith.constant 0 : index
    %5 = vector.load %arg3[%c0_3, %c0_4] : memref<32x384xf32, #tpu.memory_space<vmem>>, vector<32x384xf32>
    %cst = arith.constant dense<0.000000e+00> : vector<32x384xf32>
    %6 = tpu.matmul %4, %5, %cst {dimension_numbers = #tpu.dot_dimension_numbers<[1], [0], [0], [1], [0, 0, 1, 1], [], []>} : vector<32x32xf32>, vector<32x384xf32>, vector<32x384xf32> -> vector<32x384xf32>
    %c0_5 = arith.constant 0 : index
    %c0_6 = arith.constant 0 : index
    %7 = vector.load %arg5[%c0_5, %c0_6] : memref<1x384xf32, #tpu.memory_space<vmem>>, vector<1x384xf32>
    %8 = vector.broadcast %7 : vector<1x384xf32> to vector<32x384xf32>
    %9 = arith.addf %6, %8 : vector<32x384xf32>
    %c0_7 = arith.constant 0 : index
    %c0_8 = arith.constant 0 : index
    %10 = vector.load %arg9[%c0_7, %c0_8] : memref<32x384xf32, #tpu.memory_space<vmem>>, vector<32x384xf32>
    tpu.vector_store %arg9[%c0_7, %c0_8], %9 {strides = array<i32>} : memref<32x384xf32, #tpu.memory_space<vmem>>, vector<32x384xf32>,
    %c0_9 = arith.constant 0 : index
    %c0_10 = arith.constant 0 : index
    %11 = vector.load %arg4[%c0_9, %c0_10] : memref<128x384xf32, #tpu.memory_space<vmem>>, vector<128x384xf32>
    %c0_11 = arith.constant 0 : index
    %c0_12 = arith.constant 0 : index
    %12 = vector.load %arg6[%c0_11, %c0_12] : memref<1x128xf32, #tpu.memory_space<vmem>>, vector<1x128xf32>
    %13 = vector.shape_cast %12 : vector<1x128xf32> to vector<1x128xf32>
    %14 = vector.broadcast %13 : vector<1x128xf32> to vector<8x128xf32>
    %c0_13 = arith.constant 0 : index
    %c0_14 = arith.constant 0 : index
    %15 = vector.load %arg8[%c0_13, %c0_14] : memref<8x128xf32, #tpu.memory_space<vmem>>, vector<8x128xf32>
    %c0_i32_15 = arith.constant 0 : i32
    %c8_i32 = arith.constant 8 : i32
    %16 = arith.muli %c0_i32_15, %c8_i32 : i32
    %17 = tpu.assume_multiple %16, 8 : i32
    %18 = arith.index_cast %17 : i32 to index
    %c0_16 = arith.constant 0 : index
    %19 = vector.load %arg9[%18, %c0_16] : memref<32x384xf32, #tpu.memory_space<vmem>>, vector<8x384xf32>
    %cst_17 = arith.constant dense<0.000000e+00> : vector<8x384xf32>
    %20 = tpu.matmul %15, %11, %cst_17 {dimension_numbers = #tpu.dot_dimension_numbers<[1], [0], [0], [1], [0, 0, 1, 1], [], []>} : vector<8x128xf32>, vector<128x384xf32>, vector<8x384xf32> -> vector<8x384xf32>
    %21 = vector.extract_strided_slice %19 {offsets = [0, 0], sizes = [8, 128], strides = [1, 1]} : vector<8x384xf32> to vector<8x128xf32>
    %22 = vector.extract_strided_slice %20 {offsets = [0, 0], sizes = [8, 128], strides = [1, 1]} : vector<8x384xf32> to vector<8x128xf32>
    %23 = arith.addf %21, %22 : vector<8x128xf32>
    %24 = arith.negf %23 : vector<8x128xf32>
    %25 = math.exp %24 : vector<8x128xf32>
    %cst_18 = arith.constant 1.000000e+00 : f32
    %26 = vector.broadcast %cst_18 : f32 to vector<8x128xf32>
    %27 = arith.addf %26, %25 : vector<8x128xf32>
    %28 = arith.divf %26, %27 : vector<8x128xf32>
    %29 = vector.extract_strided_slice %19 {offsets = [0, 128], sizes = [8, 128], strides = [1, 1]} : vector<8x384xf32> to vector<8x128xf32>
    %30 = vector.extract_strided_slice %20 {offsets = [0, 128], sizes = [8, 128], strides = [1, 1]} : vector<8x384xf32> to vector<8x128xf32>
    %31 = arith.addf %29, %30 : vector<8x128xf32>
    %32 = arith.negf %31 : vector<8x128xf32>
    %33 = math.exp %32 : vector<8x128xf32>
    %cst_19 = arith.constant 1.000000e+00 : f32
    %34 = vector.broadcast %cst_19 : f32 to vector<8x128xf32>
    %35 = arith.addf %34, %33 : vector<8x128xf32>
    %36 = arith.divf %34, %35 : vector<8x128xf32>
    %37 = vector.extract_strided_slice %19 {offsets = [0, 256], sizes = [8, 128], strides = [1, 1]} : vector<8x384xf32> to vector<8x128xf32>
    %38 = vector.extract_strided_slice %20 {offsets = [0, 256], sizes = [8, 128], strides = [1, 1]} : vector<8x384xf32> to vector<8x128xf32>
    %39 = arith.addf %38, %14 : vector<8x128xf32>
    %40 = arith.mulf %28, %39 : vector<8x128xf32>
    %41 = arith.addf %37, %40 : vector<8x128xf32>
    %42 = math.tanh %41 : vector<8x128xf32>
    %43 = arith.subf %15, %42 : vector<8x128xf32>
    %44 = arith.mulf %36, %43 : vector<8x128xf32>
    %45 = arith.addf %42, %44 : vector<8x128xf32>
    %c1_i32 = arith.constant 1 : i32
    %c8_i32_20 = arith.constant 8 : i32
    %46 = arith.muli %c1_i32, %c8_i32_20 : i32
    %47 = tpu.assume_multiple %46, 8 : i32
    %48 = arith.index_cast %47 : i32 to index
    %c0_21 = arith.constant 0 : index
    %49 = vector.load %arg9[%48, %c0_21] : memref<32x384xf32, #tpu.memory_space<vmem>>, vector<8x384xf32>
    %cst_22 = arith.constant dense<0.000000e+00> : vector<8x384xf32>
    %50 = tpu.matmul %45, %11, %cst_22 {dimension_numbers = #tpu.dot_dimension_numbers<[1], [0], [0], [1], [0, 0, 1, 1], [], []>} : vector<8x128xf32>, vector<128x384xf32>, vector<8x384xf32> -> vector<8x384xf32>
    %51 = vector.extract_strided_slice %49 {offsets = [0, 0], sizes = [8, 128], strides = [1, 1]} : vector<8x384xf32> to vector<8x128xf32>
    %52 = vector.extract_strided_slice %50 {offsets = [0, 0], sizes = [8, 128], strides = [1, 1]} : vector<8x384xf32> to vector<8x128xf32>
    %53 = arith.addf %51, %52 : vector<8x128xf32>
    %54 = arith.negf %53 : vector<8x128xf32>
    %55 = math.exp %54 : vector<8x128xf32>
    %cst_23 = arith.constant 1.000000e+00 : f32
    %56 = vector.broadcast %cst_23 : f32 to vector<8x128xf32>
    %57 = arith.addf %56, %55 : vector<8x128xf32>
    %58 = arith.divf %56, %57 : vector<8x128xf32>
    %59 = vector.extract_strided_slice %49 {offsets = [0, 128], sizes = [8, 128], strides = [1, 1]} : vector<8x384xf32> to vector<8x128xf32>
    %60 = vector.extract_strided_slice %50 {offsets = [0, 128], sizes = [8, 128], strides = [1, 1]} : vector<8x384xf32> to vector<8x128xf32>
    %61 = arith.addf %59, %60 : vector<8x128xf32>
    %62 = arith.negf %61 : vector<8x128xf32>
    %63 = math.exp %62 : vector<8x128xf32>
    %cst_24 = arith.constant 1.000000e+00 : f32
    %64 = vector.broadcast %cst_24 : f32 to vector<8x128xf32>
    %65 = arith.addf %64, %63 : vector<8x128xf32>
    %66 = arith.divf %64, %65 : vector<8x128xf32>
    %67 = vector.extract_strided_slice %49 {offsets = [0, 256], sizes = [8, 128], strides = [1, 1]} : vector<8x384xf32> to vector<8x128xf32>
    %68 = vector.extract_strided_slice %50 {offsets = [0, 256], sizes = [8, 128], strides = [1, 1]} : vector<8x384xf32> to vector<8x128xf32>
    %69 = arith.addf %68, %14 : vector<8x128xf32>
    %70 = arith.mulf %58, %69 : vector<8x128xf32>
    %71 = arith.addf %67, %70 : vector<8x128xf32>
    %72 = math.tanh %71 : vector<8x128xf32>
    %73 = arith.subf %45, %72 : vector<8x128xf32>
    %74 = arith.mulf %66, %73 : vector<8x128xf32>
    %75 = arith.addf %72, %74 : vector<8x128xf32>
    %c2_i32 = arith.constant 2 : i32
    %c8_i32_25 = arith.constant 8 : i32
    %76 = arith.muli %c2_i32, %c8_i32_25 : i32
    %77 = tpu.assume_multiple %76, 8 : i32
    %78 = arith.index_cast %77 : i32 to index
    %c0_26 = arith.constant 0 : index
    %79 = vector.load %arg9[%78, %c0_26] : memref<32x384xf32, #tpu.memory_space<vmem>>, vector<8x384xf32>
    %cst_27 = arith.constant dense<0.000000e+00> : vector<8x384xf32>
    %80 = tpu.matmul %75, %11, %cst_27 {dimension_numbers = #tpu.dot_dimension_numbers<[1], [0], [0], [1], [0, 0, 1, 1], [], []>} : vector<8x128xf32>, vector<128x384xf32>, vector<8x384xf32> -> vector<8x384xf32>
    %81 = vector.extract_strided_slice %79 {offsets = [0, 0], sizes = [8, 128], strides = [1, 1]} : vector<8x384xf32> to vector<8x128xf32>
    %82 = vector.extract_strided_slice %80 {offsets = [0, 0], sizes = [8, 128], strides = [1, 1]} : vector<8x384xf32> to vector<8x128xf32>
    %83 = arith.addf %81, %82 : vector<8x128xf32>
    %84 = arith.negf %83 : vector<8x128xf32>
    %85 = math.exp %84 : vector<8x128xf32>
    %cst_28 = arith.constant 1.000000e+00 : f32
    %86 = vector.broadcast %cst_28 : f32 to vector<8x128xf32>
    %87 = arith.addf %86, %85 : vector<8x128xf32>
    %88 = arith.divf %86, %87 : vector<8x128xf32>
    %89 = vector.extract_strided_slice %79 {offsets = [0, 128], sizes = [8, 128], strides = [1, 1]} : vector<8x384xf32> to vector<8x128xf32>
    %90 = vector.extract_strided_slice %80 {offsets = [0, 128], sizes = [8, 128], strides = [1, 1]} : vector<8x384xf32> to vector<8x128xf32>
    %91 = arith.addf %89, %90 : vector<8x128xf32>
    %92 = arith.negf %91 : vector<8x128xf32>
    %93 = math.exp %92 : vector<8x128xf32>
    %cst_29 = arith.constant 1.000000e+00 : f32
    %94 = vector.broadcast %cst_29 : f32 to vector<8x128xf32>
    %95 = arith.addf %94, %93 : vector<8x128xf32>
    %96 = arith.divf %94, %95 : vector<8x128xf32>
    %97 = vector.extract_strided_slice %79 {offsets = [0, 256], sizes = [8, 128], strides = [1, 1]} : vector<8x384xf32> to vector<8x128xf32>
    %98 = vector.extract_strided_slice %80 {offsets = [0, 256], sizes = [8, 128], strides = [1, 1]} : vector<8x384xf32> to vector<8x128xf32>
    %99 = arith.addf %98, %14 : vector<8x128xf32>
    %100 = arith.mulf %88, %99 : vector<8x128xf32>
    %101 = arith.addf %97, %100 : vector<8x128xf32>
    %102 = math.tanh %101 : vector<8x128xf32>
    %103 = arith.subf %75, %102 : vector<8x128xf32>
    %104 = arith.mulf %96, %103 : vector<8x128xf32>
    %105 = arith.addf %102, %104 : vector<8x128xf32>
    %c3_i32 = arith.constant 3 : i32
    %c8_i32_30 = arith.constant 8 : i32
    %106 = arith.muli %c3_i32, %c8_i32_30 : i32
    %107 = tpu.assume_multiple %106, 8 : i32
    %108 = arith.index_cast %107 : i32 to index
    %c0_31 = arith.constant 0 : index
    %109 = vector.load %arg9[%108, %c0_31] : memref<32x384xf32, #tpu.memory_space<vmem>>, vector<8x384xf32>
    %cst_32 = arith.constant dense<0.000000e+00> : vector<8x384xf32>
    %110 = tpu.matmul %105, %11, %cst_32 {dimension_numbers = #tpu.dot_dimension_numbers<[1], [0], [0], [1], [0, 0, 1, 1], [], []>} : vector<8x128xf32>, vector<128x384xf32>, vector<8x384xf32> -> vector<8x384xf32>
    %111 = vector.extract_strided_slice %109 {offsets = [0, 0], sizes = [8, 128], strides = [1, 1]} : vector<8x384xf32> to vector<8x128xf32>
    %112 = vector.extract_strided_slice %110 {offsets = [0, 0], sizes = [8, 128], strides = [1, 1]} : vector<8x384xf32> to vector<8x128xf32>
    %113 = arith.addf %111, %112 : vector<8x128xf32>
    %114 = arith.negf %113 : vector<8x128xf32>
    %115 = math.exp %114 : vector<8x128xf32>
    %cst_33 = arith.constant 1.000000e+00 : f32
    %116 = vector.broadcast %cst_33 : f32 to vector<8x128xf32>
    %117 = arith.addf %116, %115 : vector<8x128xf32>
    %118 = arith.divf %116, %117 : vector<8x128xf32>
    %119 = vector.extract_strided_slice %109 {offsets = [0, 128], sizes = [8, 128], strides = [1, 1]} : vector<8x384xf32> to vector<8x128xf32>
    %120 = vector.extract_strided_slice %110 {offsets = [0, 128], sizes = [8, 128], strides = [1, 1]} : vector<8x384xf32> to vector<8x128xf32>
    %121 = arith.addf %119, %120 : vector<8x128xf32>
    %122 = arith.negf %121 : vector<8x128xf32>
    %123 = math.exp %122 : vector<8x128xf32>
    %cst_34 = arith.constant 1.000000e+00 : f32
    %124 = vector.broadcast %cst_34 : f32 to vector<8x128xf32>
    %125 = arith.addf %124, %123 : vector<8x128xf32>
    %126 = arith.divf %124, %125 : vector<8x128xf32>
    %127 = vector.extract_strided_slice %109 {offsets = [0, 256], sizes = [8, 128], strides = [1, 1]} : vector<8x384xf32> to vector<8x128xf32>
    %128 = vector.extract_strided_slice %110 {offsets = [0, 256], sizes = [8, 128], strides = [1, 1]} : vector<8x384xf32> to vector<8x128xf32>
    %129 = arith.addf %128, %14 : vector<8x128xf32>
    %130 = arith.mulf %118, %129 : vector<8x128xf32>
    %131 = arith.addf %127, %130 : vector<8x128xf32>
    %132 = math.tanh %131 : vector<8x128xf32>
    %133 = arith.subf %105, %132 : vector<8x128xf32>
    %134 = arith.mulf %126, %133 : vector<8x128xf32>
    %135 = arith.addf %132, %134 : vector<8x128xf32>
    %c4_i32 = arith.constant 4 : i32
    %c0_35 = arith.constant 0 : index
    %c0_36 = arith.constant 0 : index
    %136 = vector.load %arg8[%c0_35, %c0_36] : memref<8x128xf32, #tpu.memory_space<vmem>>, vector<8x128xf32>
    tpu.vector_store %arg8[%c0_35, %c0_36], %135 {strides = array<i32>} : memref<8x128xf32, #tpu.memory_space<vmem>>, vector<8x128xf32>,
    %c1_i32_37 = arith.constant 1 : i32
    %137 = arith.cmpi eq, %arg1, %c1_i32_37 : i32
    %138 = arith.extui %137 : i1 to i32
    %c0_i32_38 = arith.constant 0 : i32
    %139 = arith.cmpi ne, %138, %c0_i32_38 : i32
    scf.if %139 {
      %c0_39 = arith.constant 0 : index
      %c0_40 = arith.constant 0 : index
      %140 = vector.load %arg8[%c0_39, %c0_40] : memref<8x128xf32, #tpu.memory_space<vmem>>, vector<8x128xf32>
      %c0_41 = arith.constant 0 : index
      %c0_42 = arith.constant 0 : index
      %c0_43 = arith.constant 0 : index
      %141 = vector.load %arg7[%c0_41, %c0_42, %c0_43] : memref<1x8x128xf32, #tpu.memory_space<vmem>>, vector<1x8x128xf32>
      %142 = vector.shape_cast %141 : vector<1x8x128xf32> to vector<8x128xf32>
      %143 = vector.shape_cast %140 : vector<8x128xf32> to vector<1x8x128xf32>
      tpu.vector_store %arg7[%c0_41, %c0_42, %c0_43], %143 {strides = array<i32>} : memref<1x8x128xf32, #tpu.memory_space<vmem>>, vector<1x8x128xf32>,
    } else {
    }
    return
  }
  func.func @transform_0(%arg0: i32, %arg1: i32) -> (i32, i32, i32) {
    %c0_i32 = arith.constant 0 : i32
    %c0_i32_0 = arith.constant 0 : i32
    return %arg0, %arg1, %c0_i32 : i32, i32, i32
  }
  func.func @transform_1(%arg0: i32, %arg1: i32) -> (i32, i32) {
    %c0_i32 = arith.constant 0 : i32
    %c0_i32_0 = arith.constant 0 : i32
    %c0_i32_1 = arith.constant 0 : i32
    return %c0_i32, %c0_i32_0 : i32, i32
  }
  func.func @transform_2(%arg0: i32, %arg1: i32) -> (i32, i32) {
    %c0_i32 = arith.constant 0 : i32
    %c0_i32_0 = arith.constant 0 : i32
    %c0_i32_1 = arith.constant 0 : i32
    return %c0_i32, %c0_i32_0 : i32, i32
  }
  func.func @transform_3(%arg0: i32, %arg1: i32) -> (i32, i32) {
    %c0_i32 = arith.constant 0 : i32
    %c0_i32_0 = arith.constant 0 : i32
    %c0_i32_1 = arith.constant 0 : i32
    return %c0_i32, %c0_i32_0 : i32, i32
  }
  func.func @transform_4(%arg0: i32, %arg1: i32) -> (i32, i32) {
    %c0_i32 = arith.constant 0 : i32
    %c0_i32_0 = arith.constant 0 : i32
    %c0_i32_1 = arith.constant 0 : i32
    return %c0_i32, %c0_i32_0 : i32, i32
  }
  func.func @transform_5(%arg0: i32, %arg1: i32) -> (i32, i32, i32) {
    %c0_i32 = arith.constant 0 : i32
    %c0_i32_0 = arith.constant 0 : i32
    %c0_i32_1 = arith.constant 0 : i32
    return %arg0, %c0_i32, %c0_i32_0 : i32, i32, i32
  }
}

</mosaic_0001>

<llo_original>
// kernel: tpu_custom_call.1
$region0: #{tpu_custom_call.1}
  #allocation0 [shape = 'u32[]', space=smem, size = 0x4, offset = 0x4, fixed_abs, tag = 'smem constant byte address 0x4 - core index']
  #allocation1 [shape = 'u32[144,128]{1,0:T(1,128)}', space=vmem, size = 0x12000, scoped, tag = 'internal scratch']
  #allocation2 [shape = 'f32[8,128]{1,0:T(8,128)}', space=vmem, size = 0x1000, scoped, tag = 'scratch operand']
  #allocation3 [shape = 'f32[32,384]{1,0:T(8,128)}', space=vmem, size = 0xc000, scoped, tag = 'scratch operand']
  %s0 = inlined_call_operand.vmem [shape: f32[2,64,32], index: 0, kind: input, shape index: {}]
  %s1 = inlined_call_operand.vmem [shape: f32[32,384], index: 1, kind: input, shape index: {}]
  %s2 = inlined_call_operand.hbm [shape: f32[128,384], index: 2, kind: input, shape index: {}]
  %s3 = inlined_call_operand.vmem [shape: f32[1,384], index: 3, kind: input, shape index: {}]
  %s4 = inlined_call_operand.vmem [shape: f32[1,128], index: 4, kind: input, shape index: {}]
  %s5 = inlined_call_operand.hbm [shape: f32[2,8,128], index: 5, kind: output, shape index: {}]
  %s6 = sld [smem:[#allocation0]]
  $region65: #{tpu_custom_call.1} parent=0
    _
  %s8 = ssub.s32 1, %s6
  %s9 = scalar_select 0, %s8, %s6
  $region1: #{tpu_custom_call.1} parent=0
    #allocation4 [shape = 'u8[196608]{0}', space=vmem, size = 0x30000, scoped, tag = 'input window, operand 2, single buffered']
    #allocation5 [shape = 's32[2]{0}', space=sflag, size = 0x8, scoped, tag = 'scoped memory for tpu_custom_call.1']
    #allocation6 [shape = 's32[2]{0}', space=sflag, size = 0x8, scoped, tag = 'scoped memory for tpu_custom_call.1']
    #allocation7 [shape = 'u8[8192]{0}', space=vmem, size = 0x2000, scoped, tag = 'output window, operand 0']
    %10 = vsyncpa [#allocation5], 0
    %11 = vsyncpa [#allocation6], 0
    %s12 = scalar_lea.sflag [#allocation6], 1
    %13 = vsyncpa %s12, 0
    loop: start=0, step=1, limit=6
    $region2: #{tpu_custom_call.1} parent=1 // loop_pre_header
      _
    $region3: #{tpu_custom_call.1} parent=1 // loop_header
      %s15 = sphi 0, %s19
      %p16 = scmp.ge.s32.totalorder %s15, 6
      %s22 = sphi 0, %s34
      %s23 = sphi 0, %s30
      %s24 = sphi 0, %s22
      %s25 = sphi 0, %s23
      %s26 = sphi 0, %s24
      %s27 = sphi 0, %s25
      %s39 = sphi 0, %s41
      %s42 = sphi 0, %s39
      %s43 = sphi 0, %s42
      %s59 = sphi 0, %s43
      %s63 = sphi 0, %s63
      %s65 = sphi 0, %s63
      %s66 = sphi 0, %s65
      %s80 = sphi 0, %s66
      %s84 = sphi 0, %s84
      %s86 = sphi 0, %s84
      %s87 = sphi 0, %s86
      %s101 = sphi 0, %s87
      %s105 = sphi 0, %s105
      %s107 = sphi 0, %s105
      %s108 = sphi 0, %s107
      %s122 = sphi 0, %s108
      %s126 = sphi 0, %s126
      %s128 = sphi 0, %s126
      %s129 = sphi 0, %s128
      %s143 = sphi 0, %s129
      %s149 = sphi 0, %s151
      %s152 = sphi 0, %s149
      %s153 = sphi 0, %s152
      %s169 = sphi 0, %s153
    $region4: #{tpu_custom_call.1} parent=1 // loop_header_branch
      %18 = sbr.rel (%p16) target = $region8
    $region5: #{tpu_custom_call.1} parent=1 // loop_body
      %s20 = ssub.s32 %s15, 1
      %s21 = ssub.s32 %s15, 2
      %s28 = sadd.s32 1, %s23
      %p29 = scmp.ge.s32.totalorder %s28, 2
      %s30 = scalar_select %p29, 0, %s28
      %s31 = sadd.s32 1, %s22
      %s32 = scalar_select %p29, %s31, %s22
      %p33 = scmp.ge.s32.totalorder %s32, 2
      %s34 = scalar_select %p33, 0, %s32
      %s35 = ssub.s32 %s22, %s34
      %s36 = ssub.s32 %s23, %s30
      %s37 = sor.u32 %s35, %s36
      %p38 = scmp.eq.s32.totalorder %s37, 0
      %s40 = sadd.s32 %s39, 1
      %s41 = scalar_select %p38, %s39, %s40
      %p44 = pneg %p38
      %p45 = scmp.eq.s32.totalorder %s15, 3
      %p46 = por %p44, %p45
      %p47 = scmp.ne.s32.totalorder %s39, %s42
      %p48 = scmp.eq.s32.totalorder %s15, 0
      %p49 = por %p47, %p48
      %p50 = scmp.ne.s32.totalorder %s39, %s42
      %p51 = scmp.eq.s32.totalorder %s20, 3
      %p52 = por %p50, %p51
      %p53 = scmp.ne.s32.totalorder %s42, %s43
      %p54 = scmp.eq.s32.totalorder %s20, 0
      %p55 = por %p53, %p54
      %p56 = scmp.ne.s32.totalorder %s42, %s43
      %p57 = scmp.eq.s32.totalorder %s21, 3
      %p58 = por %p56, %p57
      %p60 = scmp.ne.s32.totalorder %s43, %s59
      %p61 = scmp.eq.s32.totalorder %s21, 0
      %p62 = por %p60, %p61
      %s64 = sadd.s32 %s63, 1
      %p67 = scmp.eq.s32.totalorder %s15, 3
      %p68 = scmp.ne.s32.totalorder %s63, %s65
      %p69 = scmp.eq.s32.totalorder %s15, 0
      %p70 = por %p68, %p69
      %p71 = scmp.ne.s32.totalorder %s63, %s65
      %p72 = scmp.eq.s32.totalorder %s20, 3
      %p73 = por %p71, %p72
      %p74 = scmp.ne.s32.totalorder %s65, %s66
      %p75 = scmp.eq.s32.totalorder %s20, 0
      %p76 = por %p74, %p75
      %p77 = scmp.ne.s32.totalorder %s65, %s66
      %p78 = scmp.eq.s32.totalorder %s21, 3
      %p79 = por %p77, %p78
      %p81 = scmp.ne.s32.totalorder %s66, %s80
      %p82 = scmp.eq.s32.totalorder %s21, 0
      %p83 = por %p81, %p82
      %s85 = sadd.s32 %s84, 1
      %p88 = scmp.eq.s32.totalorder %s15, 3
      %p89 = scmp.ne.s32.totalorder %s84, %s86
      %p90 = scmp.eq.s32.totalorder %s15, 0
      %p91 = por %p89, %p90
      %p92 = scmp.ne.s32.totalorder %s84, %s86
      %p93 = scmp.eq.s32.totalorder %s20, 3
      %p94 = por %p92, %p93
      %p95 = scmp.ne.s32.totalorder %s86, %s87
      %p96 = scmp.eq.s32.totalorder %s20, 0
      %p97 = por %p95, %p96
      %p98 = scmp.ne.s32.totalorder %s86, %s87
      %p99 = scmp.eq.s32.totalorder %s21, 3
      %p100 = por %p98, %p99
      %p102 = scmp.ne.s32.totalorder %s87, %s101
      %p103 = scmp.eq.s32.totalorder %s21, 0
      %p104 = por %p102, %p103
      %s106 = sadd.s32 %s105, 1
      %p109 = scmp.eq.s32.totalorder %s15, 3
      %p110 = scmp.ne.s32.totalorder %s105, %s107
      %p111 = scmp.eq.s32.totalorder %s15, 0
      %p112 = por %p110, %p111
      %p113 = scmp.ne.s32.totalorder %s105, %s107
      %p114 = scmp.eq.s32.totalorder %s20, 3
      %p115 = por %p113, %p114
      %p116 = scmp.ne.s32.totalorder %s107, %s108
      %p117 = scmp.eq.s32.totalorder %s20, 0
      %p118 = por %p116, %p117
      %p119 = scmp.ne.s32.totalorder %s107, %s108
      %p120 = scmp.eq.s32.totalorder %s21, 3
      %p121 = por %p119, %p120
      %p123 = scmp.ne.s32.totalorder %s108, %s122
      %p124 = scmp.eq.s32.totalorder %s21, 0
      %p125 = por %p123, %p124
      %s127 = sadd.s32 %s126, 1
      %p130 = scmp.eq.s32.totalorder %s15, 3
      %p131 = scmp.ne.s32.totalorder %s126, %s128
      %p132 = scmp.eq.s32.totalorder %s15, 0
      %p133 = por %p131, %p132
      %p134 = scmp.ne.s32.totalorder %s126, %s128
      %p135 = scmp.eq.s32.totalorder %s20, 3
      %p136 = por %p134, %p135
      %p137 = scmp.ne.s32.totalorder %s128, %s129
      %p138 = scmp.eq.s32.totalorder %s20, 0
      %p139 = por %p137, %p138
      %p140 = scmp.ne.s32.totalorder %s128, %s129
      %p141 = scmp.eq.s32.totalorder %s21, 3
      %p142 = por %p140, %p141
      %p144 = scmp.ne.s32.totalorder %s129, %s143
      %p145 = scmp.eq.s32.totalorder %s21, 0
      %p146 = por %p144, %p145
      %s147 = ssub.s32 %s22, %s34
      %p148 = scmp.eq.s32.totalorder %s147, 0
      %s150 = sadd.s32 %s149, 1
      %s151 = scalar_select %p148, %s149, %s150
      %p154 = pneg %p148
      %p155 = scmp.eq.s32.totalorder %s15, 3
      %p156 = por %p154, %p155
      %p157 = scmp.ne.s32.totalorder %s149, %s152
      %p158 = scmp.eq.s32.totalorder %s15, 0
      %p159 = por %p157, %p158
      %p160 = scmp.ne.s32.totalorder %s149, %s152
      %p161 = scmp.eq.s32.totalorder %s20, 3
      %p162 = por %p160, %p161
      %p163 = scmp.ne.s32.totalorder %s152, %s153
      %p164 = scmp.eq.s32.totalorder %s20, 0
      %p165 = por %p163, %p164
      %p166 = scmp.ne.s32.totalorder %s152, %s153
      %p167 = scmp.eq.s32.totalorder %s21, 3
      %p168 = por %p166, %p167
      %p170 = scmp.ne.s32.totalorder %s153, %s169
      %p171 = scmp.eq.s32.totalorder %s21, 0
      %p172 = por %p170, %p171
      %p173 = scmp.le.s32.totalorder 1, %s15
      %p174 = scmp.lt.s32.totalorder %s15, 5
      %p175 = pnand %p173, %p174
      %p176 = pneg %p175
      // Predicated region
      $region9: #{tpu_custom_call.1} parent=5 // pred_check
        _
      $region10: #{tpu_custom_call.1} parent=5 // pred_check_branch
        %178 = sbr.rel (%p175) target = $region12
      $region11: #{tpu_custom_call.1} parent=5 // pred_region
        %s179 = ssub.s32 %s15, 1
        // Predicated region
        $region13: #{tpu_custom_call.1} parent=11 // pred_check
          %p180 = pneg %p76
        $region14: #{tpu_custom_call.1} parent=11 // pred_check_branch
          %182 = sbr.rel (%p180) target = $region16
        $region15: #{tpu_custom_call.1} parent=11 // pred_region
          _
        $region16: #{tpu_custom_call.1} parent=11 // pred_fallthru
          _
        // Predicated region
        $region17: #{tpu_custom_call.1} parent=11 // pred_check
          %p183 = pneg %p97
        $region18: #{tpu_custom_call.1} parent=11 // pred_check_branch
          %185 = sbr.rel (%p183) target = $region20
        $region19: #{tpu_custom_call.1} parent=11 // pred_region
          %s187 = ssub.s32 6144, 6144
          %188 = vsyncadd [#allocation5], %s187
          %s189 = sshll.u32 [#allocation4], 4
          %s190 = int_to_ptr.vmem [resolvable:$true] %s189
          %195 = dma.hbm_to_vmem [thread:$0]  %s2, 6144, %s190, [#allocation5], 384, 384, 24
        $region20: #{tpu_custom_call.1} parent=11 // pred_fallthru
          _
        // Predicated region
        $region21: #{tpu_custom_call.1} parent=11 // pred_check
          %p196 = pneg %p118
        $region22: #{tpu_custom_call.1} parent=11 // pred_check_branch
          %198 = sbr.rel (%p196) target = $region24
        $region23: #{tpu_custom_call.1} parent=11 // pred_region
          _
        $region24: #{tpu_custom_call.1} parent=11 // pred_fallthru
          _
        // Predicated region
        $region25: #{tpu_custom_call.1} parent=11 // pred_check
          %p199 = pneg %p139
        $region26: #{tpu_custom_call.1} parent=11 // pred_check_branch
          %201 = sbr.rel (%p199) target = $region28
        $region27: #{tpu_custom_call.1} parent=11 // pred_region
          _
        $region28: #{tpu_custom_call.1} parent=11 // pred_fallthru
          _
      $region12: #{tpu_custom_call.1} parent=5 // pred_fallthru
        _
      %p202 = scmp.lt.s32.totalorder %s15, 4
      // Predicated region
      $region29: #{tpu_custom_call.1} parent=5 // pred_check
        %p203 = pneg %p202
      $region30: #{tpu_custom_call.1} parent=5 // pred_check_branch
        %205 = sbr.rel (%p203) target = $region32
      $region31: #{tpu_custom_call.1} parent=5 // pred_region
        // Predicated region
        $region33: #{tpu_custom_call.1} parent=31 // pred_check
          %p206 = pneg %p49
        $region34: #{tpu_custom_call.1} parent=31 // pred_check_branch
          %208 = sbr.rel (%p206) target = $region36
        $region35: #{tpu_custom_call.1} parent=31 // pred_region
          %s209 = smul.u32 4, %s23
          %p210 = scmp.lt.s32.totalorder %s22, 1
          %s211 = scalar_select %p210, %s22, 1
          %p212 = scmp.lt.s32.totalorder %s209, 7
          %s213 = scalar_select %p212, %s209, 7
          %s214 = smul.addr %s211, 8
          %s215 = sadd.s32 %s213, %s214
          %s216 = smul.addr %s215, 8
          %s217 = scalar_lea.vmem %s0, %s216
          %s218 = smul.u32 4, %s23
        $region36: #{tpu_custom_call.1} parent=31 // pred_fallthru
          _
      $region32: #{tpu_custom_call.1} parent=5 // pred_fallthru
        _
      %p219 = scmp.le.s32.totalorder 1, %s15
      %p220 = scmp.lt.s32.totalorder %s15, 5
      %p221 = pnand %p219, %p220
      %p222 = pneg %p221
      // Predicated region
      $region37: #{tpu_custom_call.1} parent=5 // pred_check
        _
      $region38: #{tpu_custom_call.1} parent=5 // pred_check_branch
        %224 = sbr.rel (%p221) target = $region40
      $region39: #{tpu_custom_call.1} parent=5 // pred_region
        %s225 = ssub.s32 %s15, 1
        // Predicated region
        $region41: #{tpu_custom_call.1} parent=39 // pred_check
          %p226 = pneg %p97
        $region42: #{tpu_custom_call.1} parent=39 // pred_check_branch
          %228 = sbr.rel (%p226) target = $region44
        $region43: #{tpu_custom_call.1} parent=39 // pred_region
          %229 = dma.done [#allocation5], 6144
        $region44: #{tpu_custom_call.1} parent=39 // pred_fallthru
          _
        %s230 = smul.u32 4, %s25
        %p231 = scmp.lt.s32.totalorder %s24, 1
        %s232 = scalar_select %p231, %s24, 1
        %p233 = scmp.lt.s32.totalorder %s230, 7
        %s234 = scalar_select %p233, %s230, 7
        %s235 = smul.addr %s232, 8
        %s236 = sadd.s32 %s234, %s235
        %s237 = smul.addr %s236, 8
        %s238 = scalar_lea.vmem %s0, %s237
        %p239 = pneg %p55
        %p240 = pneg %p52
        %p241 = pneg %p76
        %p242 = pneg %p73
        %p243 = pneg %p97
        %p244 = pneg %p94
        %p245 = pneg %p118
        %p246 = pneg %p115
        %p247 = pneg %p139
        %p248 = pneg %p136
        %p249 = pneg %p165
        %p250 = pneg %p162
        %s251 = sand.u32 %s152, 1
        %s252 = scalar_lea.sflag [#allocation6], %s251
        %s253 = sand.u32 %s152, 1
        %s254 = smul.addr %s253, 8
        %s255 = scalar_lea.vmem [#allocation7], %s254
        %s256 = smul.u32 4, %s25
        %p257 = scmp.lt.s32.totalorder %s24, 1
        %s258 = scalar_select %p257, %s24, 1
        %p259 = scmp.lt.s32.totalorder %s256, 7
        %s260 = scalar_select %p259, %s256, 7
        %s261 = smul.addr %s258, 8
        %s262 = sadd.s32 %s260, %s261
        %s263 = smul.addr %s262, 8
        %s264 = scalar_lea.vmem %s0, %s263
        %s265 = smul.u32 4, %s25
        %p266 = scmp.eq.s32.totalorder %s25, 0
        // Predicated region
        $region45: #{tpu_custom_call.1} parent=39 // pred_check
          %p267 = pneg %p266
        $region46: #{tpu_custom_call.1} parent=39 // pred_check_branch
          %269 = sbr.rel (%p267) target = $region48
        $region47: #{tpu_custom_call.1} parent=39 // pred_region
          %270 = vst [vmem:[#allocation2] sm:$0xff] 0.0
        $region48: #{tpu_custom_call.1} parent=39 // pred_fallthru
          _
        %v271 = vld [vmem:[%s264] sm:$0xff]
        %v272 = vld [vmem:[%s264 + $0x8] sm:$0xff]
        %v273 = vld [vmem:[%s264 + $0x10] sm:$0xff]
        %v274 = vld [vmem:[%s264 + $0x18] sm:$0xff]
        %v275 = vld [vmem:[%s1] sm:$0xff]
        %v276 = vld [vmem:[%s1 + $0x8] sm:$0xff]
        %v277 = vld [vmem:[%s1 + $0x10] sm:$0xff]
        %v278 = vld [vmem:[%s1 + $0x18] sm:$0xff]
        %v279 = vld [vmem:[%s1 + $0x20] sm:$0xff]
        %v280 = vld [vmem:[%s1 + $0x28] sm:$0xff]
        %v281 = vld [vmem:[%s1 + $0x30] sm:$0xff]
        %v282 = vld [vmem:[%s1 + $0x38] sm:$0xff]
        %v283 = vld [vmem:[%s1 + $0x40] sm:$0xff]
        %v284 = vld [vmem:[%s1 + $0x48] sm:$0xff]
        %v285 = vld [vmem:[%s1 + $0x50] sm:$0xff]
        %v286 = vld [vmem:[%s1 + $0x58] sm:$0xff]
        %v287 = vld [vmem:[%s3] sm:$0x7]
        %v289 = vlaneseq
        %v290 = vshrl.u32 %v289, 7
        %v291 = vsub.s32 0, %v290
        %v292 = vrot.slane %v287, %v291
        %v293 = vlaneseq
        %v294 = vshrl.u32 %v293, 7
        %v295 = vsub.s32 1, %v294
        %v296 = vrot.slane %v287, %v295
        %v297 = vlaneseq
        %v298 = vshrl.u32 %v297, 7
        %v299 = vsub.s32 2, %v298
        %v300 = vrot.slane %v287, %v299
        %vm304 = vcmask 261120
        %v306 = vsel %vm304, %v271, 0
        %v309 = vsel %vm304, %v272, 0
        %v312 = vsel %vm304, %v273, 0
        %v315 = vsel %vm304, %v274, 0
        %317 = vmatprep.subr.mxu0 %v276
        %318 = vmatpush1.msra.mxu0 %v275
        %319 = vmatprep.subr.mxu0 %v279
        %320 = vmatpush1.msra.mxu0 %v278
        %321 = vmatprep.subr.mxu0 %v282
        %322 = vmatpush1.msra.mxu0 %v281
        %323 = vmatprep.subr.mxu0 %v285
        %324 = vmatpush1.msra.mxu0 %v284
        %325 = vmatprep.subr.mxu0 0.0
        %326 = vmatpush1.msra.mxu0 0.0
        %327 = vmatprep.subr.mxu0 0.0
        %328 = vmatpush1.msra.mxu0 0.0
        %329 = vmatprep.subr.mxu0 0.0
        %330 = vmatpush1.msra.mxu0 0.0
        %331 = vmatprep.subr.mxu0 0.0
        %332 = vmatpush1.msra.mxu0 0.0
        %333 = vmatprep.subr.mxu0 0.0
        %334 = vmatpush1.msra.mxu0 0.0
        %335 = vmatprep.subr.mxu0 0.0
        %336 = vmatpush1.msra.mxu0 0.0
        %337 = vmatprep.subr.mxu0 0.0
        %338 = vmatpush1.msra.mxu0 0.0
        %339 = vmatprep.subr.mxu0 0.0
        %340 = vmatpush1.msra.mxu0 0.0
        %341 = vmatprep.subr.mxu0 0.0
        %342 = vmatpush1.msra.mxu0 0.0
        %343 = vmatprep.subr.mxu0 0.0
        %344 = vmatpush1.msra.mxu0 0.0
        %345 = vmatprep.subr.mxu0 0.0
        %346 = vmatpush1.msra.mxu0 0.0
        %347 = vmatprep.subr.mxu0 0.0
        %348 = vmatpush1.msra.mxu0 0.0
        %349 = vmatprep.subr.mxu0 0.0
        %350 = vmatpush1.msra.mxu0 0.0
        %351 = vmatprep.subr.mxu0 0.0
        %352 = vmatpush1.msra.mxu0 0.0
        %353 = vmatprep.subr.mxu0 0.0
        %354 = vmatpush1.msra.mxu0 0.0
        %355 = vmatprep.subr.mxu0 0.0
        %356 = vmatpush1.msra.mxu0 0.0
        %357 = vmatprep.subr.mxu0 0.0
        %358 = vmatpush1.msra.mxu0 0.0
        %359 = vmatprep.subr.mxu0 0.0
        %360 = vmatpush1.msra.mxu0 0.0
        %361 = vmatprep.subr.mxu0 0.0
        %362 = vmatpush1.msra.mxu0 0.0
        %363 = vmatprep.subr.mxu0 0.0
        %364 = vmatpush1.msra.mxu0 0.0
        %365 = vmatprep.subr.mxu0 0.0
        %366 = vmatpush1.msra.mxu0 0.0
        %367 = vmatprep.subr.mxu0 0.0
        %368 = vmatpush1.msra.mxu0 0.0
        %369 = vmatprep.subr.mxu0 0.0
        %370 = vmatpush1.msra.mxu0 0.0
        %371 = vmatprep.subr.mxu0 0.0
        %372 = vmatpush1.msra.mxu0 0.0
        %373 = vmatprep.subr.mxu0 0.0
        %374 = vmatpush1.msra.mxu0 0.0
        %375 = vmatprep.subr.mxu0 0.0
        %376 = vmatpush1.msra.mxu0 0.0
        %377 = vmatprep.subr.mxu0 0.0
        %378 = vmatpush1.msra.mxu0 0.0
        %379 = vmatprep.subr.mxu0 0.0
        %380 = vmatpush1.msra.mxu0 0.0
        %381 = vmatprep.mubr.f32.mxu0 0.0
        %382 = vmatmul.mubr.f32.gmra.mrb[0].mxu0 %v306
        %v383 = vpop.f32.mrb[0].mxu0
        %v384 = vadd.f32 %v292, %v383
        %v385 = vpop.f32.mrb[0].mxu0
        %v386 = vadd.f32 %v296, %v385
        %387 = vmatprep.mubr.f32.mxu0 0.0
        %388 = vmatmul.mubr.f32.gmra.mrb[0].mxu0 %v309
        %v389 = vpop.f32.mrb[0].mxu0
        %v390 = vadd.f32 %v292, %v389
        %v391 = vpop.f32.mrb[0].mxu0
        %v392 = vadd.f32 %v296, %v391
        %393 = vmatprep.mubr.f32.mxu0 0.0
        %394 = vmatmul.mubr.f32.gmra.mrb[0].mxu0 %v312
        %v395 = vpop.f32.mrb[0].mxu0
        %v396 = vadd.f32 %v292, %v395
        %v397 = vpop.f32.mrb[0].mxu0
        %v398 = vadd.f32 %v296, %v397
        %399 = vmatprep.mubr.f32.mxu0 0.0
        %400 = vmatmul.mubr.f32.gmra.mrb[0].mxu0 %v315
        %v401 = vpop.f32.mrb[0].mxu0
        %v402 = vadd.f32 %v292, %v401
        %v403 = vpop.f32.mrb[0].mxu0
        %v404 = vadd.f32 %v296, %v403
        %405 = vdwg.mxu0
        %406 = vmatprep.subr.mxu0 0.0
        %407 = vmatpush1.msra.mxu0 %v277
        %408 = vmatprep.subr.mxu0 0.0
        %409 = vmatpush1.msra.mxu0 %v280
        %410 = vmatprep.subr.mxu0 0.0
        %411 = vmatpush1.msra.mxu0 %v283
        %412 = vmatprep.subr.mxu0 0.0
        %413 = vmatpush1.msra.mxu0 %v286
        %414 = vmatprep.subr.mxu0 0.0
        %415 = vmatpush1.msra.mxu0 0.0
        %416 = vmatprep.subr.mxu0 0.0
        %417 = vmatpush1.msra.mxu0 0.0
        %418 = vmatprep.subr.mxu0 0.0
        %419 = vmatpush1.msra.mxu0 0.0
        %420 = vmatprep.subr.mxu0 0.0
        %421 = vmatpush1.msra.mxu0 0.0
        %422 = vmatprep.subr.mxu0 0.0
        %423 = vmatpush1.msra.mxu0 0.0
        %424 = vmatprep.subr.mxu0 0.0
        %425 = vmatpush1.msra.mxu0 0.0
        %426 = vmatprep.subr.mxu0 0.0
        %427 = vmatpush1.msra.mxu0 0.0
        %428 = vmatprep.subr.mxu0 0.0
        %429 = vmatpush1.msra.mxu0 0.0
        %430 = vmatprep.subr.mxu0 0.0
        %431 = vmatpush1.msra.mxu0 0.0
        %432 = vmatprep.subr.mxu0 0.0
        %433 = vmatpush1.msra.mxu0 0.0
        %434 = vmatprep.subr.mxu0 0.0
        %435 = vmatpush1.msra.mxu0 0.0
        %436 = vmatprep.subr.mxu0 0.0
        %437 = vmatpush1.msra.mxu0 0.0
        %438 = vmatprep.subr.mxu0 0.0
        %439 = vmatpush1.msra.mxu0 0.0
        %440 = vmatprep.subr.mxu0 0.0
        %441 = vmatpush1.msra.mxu0 0.0
        %442 = vmatprep.subr.mxu0 0.0
        %443 = vmatpush1.msra.mxu0 0.0
        %444 = vmatprep.subr.mxu0 0.0
        %445 = vmatpush1.msra.mxu0 0.0
        %446 = vmatprep.subr.mxu0 0.0
        %447 = vmatpush1.msra.mxu0 0.0
        %448 = vmatprep.subr.mxu0 0.0
        %449 = vmatpush1.msra.mxu0 0.0
        %450 = vmatprep.subr.mxu0 0.0
        %451 = vmatpush1.msra.mxu0 0.0
        %452 = vmatprep.subr.mxu0 0.0
        %453 = vmatpush1.msra.mxu0 0.0
        %454 = vmatprep.subr.mxu0 0.0
        %455 = vmatpush1.msra.mxu0 0.0
        %456 = vmatprep.subr.mxu0 0.0
        %457 = vmatpush1.msra.mxu0 0.0
        %458 = vmatprep.subr.mxu0 0.0
        %459 = vmatpush1.msra.mxu0 0.0
        %460 = vmatprep.subr.mxu0 0.0
        %461 = vmatpush1.msra.mxu0 0.0
        %462 = vmatprep.subr.mxu0 0.0
        %463 = vmatpush1.msra.mxu0 0.0
        %464 = vmatprep.subr.mxu0 0.0
        %465 = vmatpush1.msra.mxu0 0.0
        %466 = vmatprep.subr.mxu0 0.0
        %467 = vmatpush1.msra.mxu0 0.0
        %468 = vmatprep.subr.mxu0 0.0
        %469 = vmatpush1.msra.mxu0 0.0
        %470 = vmatprep.mubr.f32.mxu0 0.0
        %471 = vmatmul.mubr.f32.gmra.mrb[0].mxu0 %v306
        %v472 = vpop.f32.mrb[0].mxu0
        %v473 = vadd.f32 %v300, %v472
        %v474 = vpop.f32.mrb[0].mxu0
        %475 = vmatprep.mubr.f32.mxu0 0.0
        %476 = vmatmul.mubr.f32.gmra.mrb[0].mxu0 %v309
        %v477 = vpop.f32.mrb[0].mxu0
        %v478 = vadd.f32 %v300, %v477
        %v479 = vpop.f32.mrb[0].mxu0
        %480 = vmatprep.mubr.f32.mxu0 0.0
        %481 = vmatmul.mubr.f32.gmra.mrb[0].mxu0 %v312
        %v482 = vpop.f32.mrb[0].mxu0
        %v483 = vadd.f32 %v300, %v482
        %v484 = vpop.f32.mrb[0].mxu0
        %485 = vmatprep.mubr.f32.mxu0 0.0
        %486 = vmatmul.mubr.f32.gmra.mrb[0].mxu0 %v315
        %v487 = vpop.f32.mrb[0].mxu0
        %v488 = vadd.f32 %v300, %v487
        %v489 = vpop.f32.mrb[0].mxu0
        %490 = vdwg.mxu0
        %491 = vst [vmem:[#allocation3] sm:$0xff] %v384
        %492 = vst [vmem:[#allocation3 + $0x8] sm:$0xff] %v386
        %493 = vst [vmem:[#allocation3 + $0x10] sm:$0xff] %v473
        %494 = vst [vmem:[#allocation3 + $0x18] sm:$0xff] %v390
        %495 = vst [vmem:[#allocation3 + $0x20] sm:$0xff] %v392
        %496 = vst [vmem:[#allocation3 + $0x28] sm:$0xff] %v478
        %497 = vst [vmem:[#allocation3 + $0x30] sm:$0xff] %v396
        %498 = vst [vmem:[#allocation3 + $0x38] sm:$0xff] %v398
        %499 = vst [vmem:[#allocation3 + $0x40] sm:$0xff] %v483
        %500 = vst [vmem:[#allocation3 + $0x48] sm:$0xff] %v402
        %501 = vst [vmem:[#allocation3 + $0x50] sm:$0xff] %v404
        %502 = vst [vmem:[#allocation3 + $0x58] sm:$0xff] %v488
        %v503 = vld [vmem:[#allocation4] sm:$0xff]
        %v504 = vld [vmem:[#allocation4 + $0x8] sm:$0xff]
        %v505 = vld [vmem:[#allocation4 + $0x10] sm:$0xff]
        %v506 = vld [vmem:[#allocation4 + $0x18] sm:$0xff]
        %v507 = vld [vmem:[#allocation4 + $0x20] sm:$0xff]
        %v508 = vld [vmem:[#allocation4 + $0x28] sm:$0xff]
        %v509 = vld [vmem:[#allocation4 + $0x30] sm:$0xff]
        %v510 = vld [vmem:[#allocation4 + $0x38] sm:$0xff]
        %v511 = vld [vmem:[#allocation4 + $0x40] sm:$0xff]
        %v512 = vld [vmem:[#allocation4 + $0x48] sm:$0xff]
        %v513 = vld [vmem:[#allocation4 + $0x50] sm:$0xff]
        %v514 = vld [vmem:[#allocation4 + $0x58] sm:$0xff]
        %v515 = vld [vmem:[#allocation4 + $0x60] sm:$0xff]
        %v516 = vld [vmem:[#allocation4 + $0x68] sm:$0xff]
        %v517 = vld [vmem:[#allocation4 + $0x70] sm:$0xff]
        %v518 = vld [vmem:[#allocation4 + $0x78] sm:$0xff]
        %v519 = vld [vmem:[#allocation4 + $0x80] sm:$0xff]
        %v520 = vld [vmem:[#allocation4 + $0x88] sm:$0xff]
        %v521 = vld [vmem:[#allocation4 + $0x90] sm:$0xff]
        %v522 = vld [vmem:[#allocation4 + $0x98] sm:$0xff]
        %v523 = vld [vmem:[#allocation4 + $0xa0] sm:$0xff]
        %v524 = vld [vmem:[#allocation4 + $0xa8] sm:$0xff]
        %v525 = vld [vmem:[#allocation4 + $0xb0] sm:$0xff]
        %v526 = vld [vmem:[#allocation4 + $0xb8] sm:$0xff]
        %v527 = vld [vmem:[#allocation4 + $0xc0] sm:$0xff]
        %v528 = vld [vmem:[#allocation4 + $0xc8] sm:$0xff]
        %v529 = vld [vmem:[#allocation4 + $0xd0] sm:$0xff]
        %v530 = vld [vmem:[#allocation4 + $0xd8] sm:$0xff]
        %v531 = vld [vmem:[#allocation4 + $0xe0] sm:$0xff]
        %v532 = vld [vmem:[#allocation4 + $0xe8] sm:$0xff]
        %v533 = vld [vmem:[#allocation4 + $0xf0] sm:$0xff]
        %v534 = vld [vmem:[#allocation4 + $0xf8] sm:$0xff]
        %v535 = vld [vmem:[#allocation4 + $0x100] sm:$0xff]
        %v536 = vld [vmem:[#allocation4 + $0x108] sm:$0xff]
        %v537 = vld [vmem:[#allocation4 + $0x110] sm:$0xff]
        %v538 = vld [vmem:[#allocation4 + $0x118] sm:$0xff]
        %v539 = vld [vmem:[#allocation4 + $0x120] sm:$0xff]
        %v540 = vld [vmem:[#allocation4 + $0x128] sm:$0xff]
        %v541 = vld [vmem:[#allocation4 + $0x130] sm:$0xff]
        %v542 = vld [vmem:[#allocation4 + $0x138] sm:$0xff]
        %v543 = vld [vmem:[#allocation4 + $0x140] sm:$0xff]
        %v544 = vld [vmem:[#allocation4 + $0x148] sm:$0xff]
        %v545 = vld [vmem:[#allocation4 + $0x150] sm:$0xff]
        %v546 = vld [vmem:[#allocation4 + $0x158] sm:$0xff]
        %v547 = vld [vmem:[#allocation4 + $0x160] sm:$0xff]
        %v548 = vld [vmem:[#allocation4 + $0x168] sm:$0xff]
        %v549 = vld [vmem:[#allocation4 + $0x170] sm:$0xff]
        %v550 = vld [vmem:[#allocation4 + $0x178] sm:$0xff]
        %v551 = vld [vmem:[%s4] sm:$0x1]
        %v553 = vlaneseq
        %v554 = vshrl.u32 %v553, 7
        %v555 = vsub.s32 0, %v554
        %v556 = vrot.slane %v551, %v555
        %v558 = vld [vmem:[#allocation2] sm:$0xff]
        %s559 = smul.u32 0, 3
        %s560 = smul.addr %s559, 8
        %s561 = scalar_lea.vmem [#allocation3], %s560
        %v562 = vld [vmem:[%s561] sm:$0xff]
        %v563 = vld [vmem:[%s561 + $0x8] sm:$0xff]
        %v564 = vld [vmem:[%s561 + $0x10] sm:$0xff]
        %565 = vmatprep.subr.mxu0 %v504
        %566 = vmatpush1.msra.mxu0 %v503
        %567 = vmatprep.subr.mxu0 %v507
        %568 = vmatpush1.msra.mxu0 %v506
        %569 = vmatprep.subr.mxu0 %v510
        %570 = vmatpush1.msra.mxu0 %v509
        %571 = vmatprep.subr.mxu0 %v513
        %572 = vmatpush1.msra.mxu0 %v512
        %573 = vmatprep.subr.mxu0 %v516
        %574 = vmatpush1.msra.mxu0 %v515
        %575 = vmatprep.subr.mxu0 %v519
        %576 = vmatpush1.msra.mxu0 %v518
        %577 = vmatprep.subr.mxu0 %v522
        %578 = vmatpush1.msra.mxu0 %v521
        %579 = vmatprep.subr.mxu0 %v525
        %580 = vmatpush1.msra.mxu0 %v524
        %581 = vmatprep.subr.mxu0 %v528
        %582 = vmatpush1.msra.mxu0 %v527
        %583 = vmatprep.subr.mxu0 %v531
        %584 = vmatpush1.msra.mxu0 %v530
        %585 = vmatprep.subr.mxu0 %v534
        %586 = vmatpush1.msra.mxu0 %v533
        %587 = vmatprep.subr.mxu0 %v537
        %588 = vmatpush1.msra.mxu0 %v536
        %589 = vmatprep.subr.mxu0 %v540
        %590 = vmatpush1.msra.mxu0 %v539
        %591 = vmatprep.subr.mxu0 %v543
        %592 = vmatpush1.msra.mxu0 %v542
        %593 = vmatprep.subr.mxu0 %v546
        %594 = vmatpush1.msra.mxu0 %v545
        %595 = vmatprep.subr.mxu0 %v549
        %596 = vmatpush1.msra.mxu0 %v548
        %597 = vmatprep.subr.mxu0 0.0
        %598 = vmatpush1.msra.mxu0 0.0
        %599 = vmatprep.subr.mxu0 0.0
        %600 = vmatpush1.msra.mxu0 0.0
        %601 = vmatprep.subr.mxu0 0.0
        %602 = vmatpush1.msra.mxu0 0.0
        %603 = vmatprep.subr.mxu0 0.0
        %604 = vmatpush1.msra.mxu0 0.0
        %605 = vmatprep.subr.mxu0 0.0
        %606 = vmatpush1.msra.mxu0 0.0
        %607 = vmatprep.subr.mxu0 0.0
        %608 = vmatpush1.msra.mxu0 0.0
        %609 = vmatprep.subr.mxu0 0.0
        %610 = vmatpush1.msra.mxu0 0.0
        %611 = vmatprep.subr.mxu0 0.0
        %612 = vmatpush1.msra.mxu0 0.0
        %613 = vmatprep.subr.mxu0 0.0
        %614 = vmatpush1.msra.mxu0 0.0
        %615 = vmatprep.subr.mxu0 0.0
        %616 = vmatpush1.msra.mxu0 0.0
        %617 = vmatprep.subr.mxu0 0.0
        %618 = vmatpush1.msra.mxu0 0.0
        %619 = vmatprep.subr.mxu0 0.0
        %620 = vmatpush1.msra.mxu0 0.0
        %621 = vmatprep.subr.mxu0 0.0
        %622 = vmatpush1.msra.mxu0 0.0
        %623 = vmatprep.subr.mxu0 0.0
        %624 = vmatpush1.msra.mxu0 0.0
        %625 = vmatprep.subr.mxu0 0.0
        %626 = vmatpush1.msra.mxu0 0.0
        %627 = vmatprep.subr.mxu0 0.0
        %628 = vmatpush1.msra.mxu0 0.0
        %629 = vmatprep.mubr.f32.mxu0 0.0
        %630 = vmatmul.mubr.f32.gmra.mrb[0].mxu0 %v558
        %v631 = vpop.f32.mrb[0].mxu0
        %v632 = vadd.f32 0.0, %v631
        %v633 = vpop.f32.mrb[0].mxu0
        %v634 = vadd.f32 0.0, %v633
        %635 = vdwg.mxu0
        %636 = vmatprep.subr.mxu0 0.0
        %637 = vmatpush1.msra.mxu0 %v505
        %638 = vmatprep.subr.mxu0 0.0
        %639 = vmatpush1.msra.mxu0 %v508
        %640 = vmatprep.subr.mxu0 0.0
        %641 = vmatpush1.msra.mxu0 %v511
        %642 = vmatprep.subr.mxu0 0.0
        %643 = vmatpush1.msra.mxu0 %v514
        %644 = vmatprep.subr.mxu0 0.0
        %645 = vmatpush1.msra.mxu0 %v517
        %646 = vmatprep.subr.mxu0 0.0
        %647 = vmatpush1.msra.mxu0 %v520
        %648 = vmatprep.subr.mxu0 0.0
        %649 = vmatpush1.msra.mxu0 %v523
        %650 = vmatprep.subr.mxu0 0.0
        %651 = vmatpush1.msra.mxu0 %v526
        %652 = vmatprep.subr.mxu0 0.0
        %653 = vmatpush1.msra.mxu0 %v529
        %654 = vmatprep.subr.mxu0 0.0
        %655 = vmatpush1.msra.mxu0 %v532
        %656 = vmatprep.subr.mxu0 0.0
        %657 = vmatpush1.msra.mxu0 %v535
        %658 = vmatprep.subr.mxu0 0.0
        %659 = vmatpush1.msra.mxu0 %v538
        %660 = vmatprep.subr.mxu0 0.0
        %661 = vmatpush1.msra.mxu0 %v541
        %662 = vmatprep.subr.mxu0 0.0
        %663 = vmatpush1.msra.mxu0 %v544
        %664 = vmatprep.subr.mxu0 0.0
        %665 = vmatpush1.msra.mxu0 %v547
        %666 = vmatprep.subr.mxu0 0.0
        %667 = vmatpush1.msra.mxu0 %v550
        %668 = vmatprep.subr.mxu0 0.0
        %669 = vmatpush1.msra.mxu0 0.0
        %670 = vmatprep.subr.mxu0 0.0
        %671 = vmatpush1.msra.mxu0 0.0
        %672 = vmatprep.subr.mxu0 0.0
        %673 = vmatpush1.msra.mxu0 0.0
        %674 = vmatprep.subr.mxu0 0.0
        %675 = vmatpush1.msra.mxu0 0.0
        %676 = vmatprep.subr.mxu0 0.0
        %677 = vmatpush1.msra.mxu0 0.0
        %678 = vmatprep.subr.mxu0 0.0
        %679 = vmatpush1.msra.mxu0 0.0
        %680 = vmatprep.subr.mxu0 0.0
        %681 = vmatpush1.msra.mxu0 0.0
        %682 = vmatprep.subr.mxu0 0.0
        %683 = vmatpush1.msra.mxu0 0.0
        %684 = vmatprep.subr.mxu0 0.0
        %685 = vmatpush1.msra.mxu0 0.0
        %686 = vmatprep.subr.mxu0 0.0
        %687 = vmatpush1.msra.mxu0 0.0
        %688 = vmatprep.subr.mxu0 0.0
        %689 = vmatpush1.msra.mxu0 0.0
        %690 = vmatprep.subr.mxu0 0.0
        %691 = vmatpush1.msra.mxu0 0.0
        %692 = vmatprep.subr.mxu0 0.0
        %693 = vmatpush1.msra.mxu0 0.0
        %694 = vmatprep.subr.mxu0 0.0
        %695 = vmatpush1.msra.mxu0 0.0
        %696 = vmatprep.subr.mxu0 0.0
        %697 = vmatpush1.msra.mxu0 0.0
        %698 = vmatprep.subr.mxu0 0.0
        %699 = vmatpush1.msra.mxu0 0.0
        %700 = vmatprep.mubr.f32.mxu0 0.0
        %701 = vmatmul.mubr.f32.gmra.mrb[0].mxu0 %v558
        %v702 = vpop.f32.mrb[0].mxu0
        %v703 = vadd.f32 0.0, %v702
        %v704 = vpop.f32.mrb[0].mxu0
        %705 = vdwg.mxu0
        %v706 = vadd.f32 %v562, %v632
        %v707 = vxor.u32 %v706, 2147483648
        %v708 = vmul.f32 %v707, 1.442695
        %v709 = vpow.pop %v708
        %v710 = vadd.f32 %v709, 1.0
        %v711 = vrcp.pop %v710
        %v712 = vmul.f32 1.0, %v711
        %v713 = vadd.f32 %v563, %v634
        %v714 = vxor.u32 %v713, 2147483648
        %v715 = vmul.f32 %v714, 1.442695
        %v716 = vpow.pop %v715
        %v717 = vadd.f32 %v716, 1.0
        %v718 = vrcp.pop %v717
        %v719 = vmul.f32 1.0, %v718
        %v720 = vadd.f32 %v703, %v556
        %v721 = vmul.f32 %v712, %v720
        %v722 = vadd.f32 %v564, %v721
        %v723 = vtanh.pop %v722
        %v724 = vsub.f32 %v558, %v723
        %v725 = vmul.f32 %v719, %v724
        %v726 = vadd.f32 %v723, %v725
        %s727 = smul.u32 1, 3
        %s728 = smul.addr %s727, 8
        %s729 = scalar_lea.vmem [#allocation3], %s728
        %v730 = vld [vmem:[%s729] sm:$0xff]
        %v731 = vld [vmem:[%s729 + $0x8] sm:$0xff]
        %v732 = vld [vmem:[%s729 + $0x10] sm:$0xff]
        %733 = vmatprep.subr.mxu0 %v504
        %734 = vmatpush1.msra.mxu0 %v503
        %735 = vmatprep.subr.mxu0 %v507
        %736 = vmatpush1.msra.mxu0 %v506
        %737 = vmatprep.subr.mxu0 %v510
        %738 = vmatpush1.msra.mxu0 %v509
        %739 = vmatprep.subr.mxu0 %v513
        %740 = vmatpush1.msra.mxu0 %v512
        %741 = vmatprep.subr.mxu0 %v516
        %742 = vmatpush1.msra.mxu0 %v515
        %743 = vmatprep.subr.mxu0 %v519
        %744 = vmatpush1.msra.mxu0 %v518
        %745 = vmatprep.subr.mxu0 %v522
        %746 = vmatpush1.msra.mxu0 %v521
        %747 = vmatprep.subr.mxu0 %v525
        %748 = vmatpush1.msra.mxu0 %v524
        %749 = vmatprep.subr.mxu0 %v528
        %750 = vmatpush1.msra.mxu0 %v527
        %751 = vmatprep.subr.mxu0 %v531
        %752 = vmatpush1.msra.mxu0 %v530
        %753 = vmatprep.subr.mxu0 %v534
        %754 = vmatpush1.msra.mxu0 %v533
        %755 = vmatprep.subr.mxu0 %v537
        %756 = vmatpush1.msra.mxu0 %v536
        %757 = vmatprep.subr.mxu0 %v540
        %758 = vmatpush1.msra.mxu0 %v539
        %759 = vmatprep.subr.mxu0 %v543
        %760 = vmatpush1.msra.mxu0 %v542
        %761 = vmatprep.subr.mxu0 %v546
        %762 = vmatpush1.msra.mxu0 %v545
        %763 = vmatprep.subr.mxu0 %v549
        %764 = vmatpush1.msra.mxu0 %v548
        %765 = vmatprep.subr.mxu0 0.0
        %766 = vmatpush1.msra.mxu0 0.0
        %767 = vmatprep.subr.mxu0 0.0
        %768 = vmatpush1.msra.mxu0 0.0
        %769 = vmatprep.subr.mxu0 0.0
        %770 = vmatpush1.msra.mxu0 0.0
        %771 = vmatprep.subr.mxu0 0.0
        %772 = vmatpush1.msra.mxu0 0.0
        %773 = vmatprep.subr.mxu0 0.0
        %774 = vmatpush1.msra.mxu0 0.0
        %775 = vmatprep.subr.mxu0 0.0
        %776 = vmatpush1.msra.mxu0 0.0
        %777 = vmatprep.subr.mxu0 0.0
        %778 = vmatpush1.msra.mxu0 0.0
        %779 = vmatprep.subr.mxu0 0.0
        %780 = vmatpush1.msra.mxu0 0.0
        %781 = vmatprep.subr.mxu0 0.0
        %782 = vmatpush1.msra.mxu0 0.0
        %783 = vmatprep.subr.mxu0 0.0
        %784 = vmatpush1.msra.mxu0 0.0
        %785 = vmatprep.subr.mxu0 0.0
        %786 = vmatpush1.msra.mxu0 0.0
        %787 = vmatprep.subr.mxu0 0.0
        %788 = vmatpush1.msra.mxu0 0.0
        %789 = vmatprep.subr.mxu0 0.0
        %790 = vmatpush1.msra.mxu0 0.0
        %791 = vmatprep.subr.mxu0 0.0
        %792 = vmatpush1.msra.mxu0 0.0
        %793 = vmatprep.subr.mxu0 0.0
        %794 = vmatpush1.msra.mxu0 0.0
        %795 = vmatprep.subr.mxu0 0.0
        %796 = vmatpush1.msra.mxu0 0.0
        %797 = vmatprep.mubr.f32.mxu0 0.0
        %798 = vmatmul.mubr.f32.gmra.mrb[0].mxu0 %v726
        %v799 = vpop.f32.mrb[0].mxu0
        %v800 = vadd.f32 0.0, %v799
        %v801 = vpop.f32.mrb[0].mxu0
        %v802 = vadd.f32 0.0, %v801
        %803 = vdwg.mxu0
        %804 = vmatprep.subr.mxu0 0.0
        %805 = vmatpush1.msra.mxu0 %v505
        %806 = vmatprep.subr.mxu0 0.0
        %807 = vmatpush1.msra.mxu0 %v508
        %808 = vmatprep.subr.mxu0 0.0
        %809 = vmatpush1.msra.mxu0 %v511
        %810 = vmatprep.subr.mxu0 0.0
        %811 = vmatpush1.msra.mxu0 %v514
        %812 = vmatprep.subr.mxu0 0.0
        %813 = vmatpush1.msra.mxu0 %v517
        %814 = vmatprep.subr.mxu0 0.0
        %815 = vmatpush1.msra.mxu0 %v520
        %816 = vmatprep.subr.mxu0 0.0
        %817 = vmatpush1.msra.mxu0 %v523
        %818 = vmatprep.subr.mxu0 0.0
        %819 = vmatpush1.msra.mxu0 %v526
        %820 = vmatprep.subr.mxu0 0.0
        %821 = vmatpush1.msra.mxu0 %v529
        %822 = vmatprep.subr.mxu0 0.0
        %823 = vmatpush1.msra.mxu0 %v532
        %824 = vmatprep.subr.mxu0 0.0
        %825 = vmatpush1.msra.mxu0 %v535
        %826 = vmatprep.subr.mxu0 0.0
        %827 = vmatpush1.msra.mxu0 %v538
        %828 = vmatprep.subr.mxu0 0.0
        %829 = vmatpush1.msra.mxu0 %v541
        %830 = vmatprep.subr.mxu0 0.0
        %831 = vmatpush1.msra.mxu0 %v544
        %832 = vmatprep.subr.mxu0 0.0
        %833 = vmatpush1.msra.mxu0 %v547
        %834 = vmatprep.subr.mxu0 0.0
        %835 = vmatpush1.msra.mxu0 %v550
        %836 = vmatprep.subr.mxu0 0.0
        %837 = vmatpush1.msra.mxu0 0.0
        %838 = vmatprep.subr.mxu0 0.0
        %839 = vmatpush1.msra.mxu0 0.0
        %840 = vmatprep.subr.mxu0 0.0
        %841 = vmatpush1.msra.mxu0 0.0
        %842 = vmatprep.subr.mxu0 0.0
        %843 = vmatpush1.msra.mxu0 0.0
        %844 = vmatprep.subr.mxu0 0.0
        %845 = vmatpush1.msra.mxu0 0.0
        %846 = vmatprep.subr.mxu0 0.0
        %847 = vmatpush1.msra.mxu0 0.0
        %848 = vmatprep.subr.mxu0 0.0
        %849 = vmatpush1.msra.mxu0 0.0
        %850 = vmatprep.subr.mxu0 0.0
        %851 = vmatpush1.msra.mxu0 0.0
        %852 = vmatprep.subr.mxu0 0.0
        %853 = vmatpush1.msra.mxu0 0.0
        %854 = vmatprep.subr.mxu0 0.0
        %855 = vmatpush1.msra.mxu0 0.0
        %856 = vmatprep.subr.mxu0 0.0
        %857 = vmatpush1.msra.mxu0 0.0
        %858 = vmatprep.subr.mxu0 0.0
        %859 = vmatpush1.msra.mxu0 0.0
        %860 = vmatprep.subr.mxu0 0.0
        %861 = vmatpush1.msra.mxu0 0.0
        %862 = vmatprep.subr.mxu0 0.0
        %863 = vmatpush1.msra.mxu0 0.0
        %864 = vmatprep.subr.mxu0 0.0
        %865 = vmatpush1.msra.mxu0 0.0
        %866 = vmatprep.subr.mxu0 0.0
        %867 = vmatpush1.msra.mxu0 0.0
        %868 = vmatprep.mubr.f32.mxu0 0.0
        %869 = vmatmul.mubr.f32.gmra.mrb[0].mxu0 %v726
        %v870 = vpop.f32.mrb[0].mxu0
        %v871 = vadd.f32 0.0, %v870
        %v872 = vpop.f32.mrb[0].mxu0
        %873 = vdwg.mxu0
        %v874 = vadd.f32 %v730, %v800
        %v875 = vxor.u32 %v874, 2147483648
        %v876 = vmul.f32 %v875, 1.442695
        %v877 = vpow.pop %v876
        %v878 = vadd.f32 %v877, 1.0
        %v879 = vrcp.pop %v878
        %v880 = vmul.f32 1.0, %v879
        %v881 = vadd.f32 %v731, %v802
        %v882 = vxor.u32 %v881, 2147483648
        %v883 = vmul.f32 %v882, 1.442695
        %v884 = vpow.pop %v883
        %v885 = vadd.f32 %v884, 1.0
        %v886 = vrcp.pop %v885
        %v887 = vmul.f32 1.0, %v886
        %v888 = vadd.f32 %v871, %v556
        %v889 = vmul.f32 %v880, %v888
        %v890 = vadd.f32 %v732, %v889
        %v891 = vtanh.pop %v890
        %v892 = vsub.f32 %v726, %v891
        %v893 = vmul.f32 %v887, %v892
        %v894 = vadd.f32 %v891, %v893
        %s895 = smul.u32 2, 3
        %s896 = smul.addr %s895, 8
        %s897 = scalar_lea.vmem [#allocation3], %s896
        %v898 = vld [vmem:[%s897] sm:$0xff]
        %v899 = vld [vmem:[%s897 + $0x8] sm:$0xff]
        %v900 = vld [vmem:[%s897 + $0x10] sm:$0xff]
        %901 = vmatprep.subr.mxu0 %v504
        %902 = vmatpush1.msra.mxu0 %v503
        %903 = vmatprep.subr.mxu0 %v507
        %904 = vmatpush1.msra.mxu0 %v506
        %905 = vmatprep.subr.mxu0 %v510
        %906 = vmatpush1.msra.mxu0 %v509
        %907 = vmatprep.subr.mxu0 %v513
        %908 = vmatpush1.msra.mxu0 %v512
        %909 = vmatprep.subr.mxu0 %v516
        %910 = vmatpush1.msra.mxu0 %v515
        %911 = vmatprep.subr.mxu0 %v519
        %912 = vmatpush1.msra.mxu0 %v518
        %913 = vmatprep.subr.mxu0 %v522
        %914 = vmatpush1.msra.mxu0 %v521
        %915 = vmatprep.subr.mxu0 %v525
        %916 = vmatpush1.msra.mxu0 %v524
        %917 = vmatprep.subr.mxu0 %v528
        %918 = vmatpush1.msra.mxu0 %v527
        %919 = vmatprep.subr.mxu0 %v531
        %920 = vmatpush1.msra.mxu0 %v530
        %921 = vmatprep.subr.mxu0 %v534
        %922 = vmatpush1.msra.mxu0 %v533
        %923 = vmatprep.subr.mxu0 %v537
        %924 = vmatpush1.msra.mxu0 %v536
        %925 = vmatprep.subr.mxu0 %v540
        %926 = vmatpush1.msra.mxu0 %v539
        %927 = vmatprep.subr.mxu0 %v543
        %928 = vmatpush1.msra.mxu0 %v542
        %929 = vmatprep.subr.mxu0 %v546
        %930 = vmatpush1.msra.mxu0 %v545
        %931 = vmatprep.subr.mxu0 %v549
        %932 = vmatpush1.msra.mxu0 %v548
        %933 = vmatprep.subr.mxu0 0.0
        %934 = vmatpush1.msra.mxu0 0.0
        %935 = vmatprep.subr.mxu0 0.0
        %936 = vmatpush1.msra.mxu0 0.0
        %937 = vmatprep.subr.mxu0 0.0
        %938 = vmatpush1.msra.mxu0 0.0
        %939 = vmatprep.subr.mxu0 0.0
        %940 = vmatpush1.msra.mxu0 0.0
        %941 = vmatprep.subr.mxu0 0.0
        %942 = vmatpush1.msra.mxu0 0.0
        %943 = vmatprep.subr.mxu0 0.0
        %944 = vmatpush1.msra.mxu0 0.0
        %945 = vmatprep.subr.mxu0 0.0
        %946 = vmatpush1.msra.mxu0 0.0
        %947 = vmatprep.subr.mxu0 0.0
        %948 = vmatpush1.msra.mxu0 0.0
        %949 = vmatprep.subr.mxu0 0.0
        %950 = vmatpush1.msra.mxu0 0.0
        %951 = vmatprep.subr.mxu0 0.0
        %952 = vmatpush1.msra.mxu0 0.0
        %953 = vmatprep.subr.mxu0 0.0
        %954 = vmatpush1.msra.mxu0 0.0
        %955 = vmatprep.subr.mxu0 0.0
        %956 = vmatpush1.msra.mxu0 0.0
        %957 = vmatprep.subr.mxu0 0.0
        %958 = vmatpush1.msra.mxu0 0.0
        %959 = vmatprep.subr.mxu0 0.0
        %960 = vmatpush1.msra.mxu0 0.0
        %961 = vmatprep.subr.mxu0 0.0
        %962 = vmatpush1.msra.mxu0 0.0
        %963 = vmatprep.subr.mxu0 0.0
        %964 = vmatpush1.msra.mxu0 0.0
        %965 = vmatprep.mubr.f32.mxu0 0.0
        %966 = vmatmul.mubr.f32.gmra.mrb[0].mxu0 %v894
        %v967 = vpop.f32.mrb[0].mxu0
        %v968 = vadd.f32 0.0, %v967
        %v969 = vpop.f32.mrb[0].mxu0
        %v970 = vadd.f32 0.0, %v969
        %971 = vdwg.mxu0
        %972 = vmatprep.subr.mxu0 0.0
        %973 = vmatpush1.msra.mxu0 %v505
        %974 = vmatprep.subr.mxu0 0.0
        %975 = vmatpush1.msra.mxu0 %v508
        %976 = vmatprep.subr.mxu0 0.0
        %977 = vmatpush1.msra.mxu0 %v511
        %978 = vmatprep.subr.mxu0 0.0
        %979 = vmatpush1.msra.mxu0 %v514
        %980 = vmatprep.subr.mxu0 0.0
        %981 = vmatpush1.msra.mxu0 %v517
        %982 = vmatprep.subr.mxu0 0.0
        %983 = vmatpush1.msra.mxu0 %v520
        %984 = vmatprep.subr.mxu0 0.0
        %985 = vmatpush1.msra.mxu0 %v523
        %986 = vmatprep.subr.mxu0 0.0
        %987 = vmatpush1.msra.mxu0 %v526
        %988 = vmatprep.subr.mxu0 0.0
        %989 = vmatpush1.msra.mxu0 %v529
        %990 = vmatprep.subr.mxu0 0.0
        %991 = vmatpush1.msra.mxu0 %v532
        %992 = vmatprep.subr.mxu0 0.0
        %993 = vmatpush1.msra.mxu0 %v535
        %994 = vmatprep.subr.mxu0 0.0
        %995 = vmatpush1.msra.mxu0 %v538
        %996 = vmatprep.subr.mxu0 0.0
        %997 = vmatpush1.msra.mxu0 %v541
        %998 = vmatprep.subr.mxu0 0.0
        %999 = vmatpush1.msra.mxu0 %v544
        %1000 = vmatprep.subr.mxu0 0.0
        %1001 = vmatpush1.msra.mxu0 %v547
        %1002 = vmatprep.subr.mxu0 0.0
        %1003 = vmatpush1.msra.mxu0 %v550
        %1004 = vmatprep.subr.mxu0 0.0
        %1005 = vmatpush1.msra.mxu0 0.0
        %1006 = vmatprep.subr.mxu0 0.0
        %1007 = vmatpush1.msra.mxu0 0.0
        %1008 = vmatprep.subr.mxu0 0.0
        %1009 = vmatpush1.msra.mxu0 0.0
        %1010 = vmatprep.subr.mxu0 0.0
        %1011 = vmatpush1.msra.mxu0 0.0
        %1012 = vmatprep.subr.mxu0 0.0
        %1013 = vmatpush1.msra.mxu0 0.0
        %1014 = vmatprep.subr.mxu0 0.0
        %1015 = vmatpush1.msra.mxu0 0.0
        %1016 = vmatprep.subr.mxu0 0.0
        %1017 = vmatpush1.msra.mxu0 0.0
        %1018 = vmatprep.subr.mxu0 0.0
        %1019 = vmatpush1.msra.mxu0 0.0
        %1020 = vmatprep.subr.mxu0 0.0
        %1021 = vmatpush1.msra.mxu0 0.0
        %1022 = vmatprep.subr.mxu0 0.0
        %1023 = vmatpush1.msra.mxu0 0.0
        %1024 = vmatprep.subr.mxu0 0.0
        %1025 = vmatpush1.msra.mxu0 0.0
        %1026 = vmatprep.subr.mxu0 0.0
        %1027 = vmatpush1.msra.mxu0 0.0
        %1028 = vmatprep.subr.mxu0 0.0
        %1029 = vmatpush1.msra.mxu0 0.0
        %1030 = vmatprep.subr.mxu0 0.0
        %1031 = vmatpush1.msra.mxu0 0.0
        %1032 = vmatprep.subr.mxu0 0.0
        %1033 = vmatpush1.msra.mxu0 0.0
        %1034 = vmatprep.subr.mxu0 0.0
        %1035 = vmatpush1.msra.mxu0 0.0
        %1036 = vmatprep.mubr.f32.mxu0 0.0
        %1037 = vmatmul.mubr.f32.gmra.mrb[0].mxu0 %v894
        %v1038 = vpop.f32.mrb[0].mxu0
        %v1039 = vadd.f32 0.0, %v1038
        %v1040 = vpop.f32.mrb[0].mxu0
        %1041 = vdwg.mxu0
        %v1042 = vadd.f32 %v898, %v968
        %v1043 = vxor.u32 %v1042, 2147483648
        %v1044 = vmul.f32 %v1043, 1.442695
        %v1045 = vpow.pop %v1044
        %v1046 = vadd.f32 %v1045, 1.0
        %v1047 = vrcp.pop %v1046
        %v1048 = vmul.f32 1.0, %v1047
        %v1049 = vadd.f32 %v899, %v970
        %v1050 = vxor.u32 %v1049, 2147483648
        %v1051 = vmul.f32 %v1050, 1.442695
        %v1052 = vpow.pop %v1051
        %v1053 = vadd.f32 %v1052, 1.0
        %v1054 = vrcp.pop %v1053
        %v1055 = vmul.f32 1.0, %v1054
        %v1056 = vadd.f32 %v1039, %v556
        %v1057 = vmul.f32 %v1048, %v1056
        %v1058 = vadd.f32 %v900, %v1057
        %v1059 = vtanh.pop %v1058
        %v1060 = vsub.f32 %v894, %v1059
        %v1061 = vmul.f32 %v1055, %v1060
        %v1062 = vadd.f32 %v1059, %v1061
        %s1063 = smul.u32 3, 3
        %s1064 = smul.addr %s1063, 8
        %s1065 = scalar_lea.vmem [#allocation3], %s1064
        %v1066 = vld [vmem:[%s1065] sm:$0xff]
        %v1067 = vld [vmem:[%s1065 + $0x8] sm:$0xff]
        %v1068 = vld [vmem:[%s1065 + $0x10] sm:$0xff]
        %1069 = vmatprep.subr.mxu0 %v504
        %1070 = vmatpush1.msra.mxu0 %v503
        %1071 = vmatprep.subr.mxu0 %v507
        %1072 = vmatpush1.msra.mxu0 %v506
        %1073 = vmatprep.subr.mxu0 %v510
        %1074 = vmatpush1.msra.mxu0 %v509
        %1075 = vmatprep.subr.mxu0 %v513
        %1076 = vmatpush1.msra.mxu0 %v512
        %1077 = vmatprep.subr.mxu0 %v516
        %1078 = vmatpush1.msra.mxu0 %v515
        %1079 = vmatprep.subr.mxu0 %v519
        %1080 = vmatpush1.msra.mxu0 %v518
        %1081 = vmatprep.subr.mxu0 %v522
        %1082 = vmatpush1.msra.mxu0 %v521
        %1083 = vmatprep.subr.mxu0 %v525
        %1084 = vmatpush1.msra.mxu0 %v524
        %1085 = vmatprep.subr.mxu0 %v528
        %1086 = vmatpush1.msra.mxu0 %v527
        %1087 = vmatprep.subr.mxu0 %v531
        %1088 = vmatpush1.msra.mxu0 %v530
        %1089 = vmatprep.subr.mxu0 %v534
        %1090 = vmatpush1.msra.mxu0 %v533
        %1091 = vmatprep.subr.mxu0 %v537
        %1092 = vmatpush1.msra.mxu0 %v536
        %1093 = vmatprep.subr.mxu0 %v540
        %1094 = vmatpush1.msra.mxu0 %v539
        %1095 = vmatprep.subr.mxu0 %v543
        %1096 = vmatpush1.msra.mxu0 %v542
        %1097 = vmatprep.subr.mxu0 %v546
        %1098 = vmatpush1.msra.mxu0 %v545
        %1099 = vmatprep.subr.mxu0 %v549
        %1100 = vmatpush1.msra.mxu0 %v548
        %1101 = vmatprep.subr.mxu0 0.0
        %1102 = vmatpush1.msra.mxu0 0.0
        %1103 = vmatprep.subr.mxu0 0.0
        %1104 = vmatpush1.msra.mxu0 0.0
        %1105 = vmatprep.subr.mxu0 0.0
        %1106 = vmatpush1.msra.mxu0 0.0
        %1107 = vmatprep.subr.mxu0 0.0
        %1108 = vmatpush1.msra.mxu0 0.0
        %1109 = vmatprep.subr.mxu0 0.0
        %1110 = vmatpush1.msra.mxu0 0.0
        %1111 = vmatprep.subr.mxu0 0.0
        %1112 = vmatpush1.msra.mxu0 0.0
        %1113 = vmatprep.subr.mxu0 0.0
        %1114 = vmatpush1.msra.mxu0 0.0
        %1115 = vmatprep.subr.mxu0 0.0
        %1116 = vmatpush1.msra.mxu0 0.0
        %1117 = vmatprep.subr.mxu0 0.0
        %1118 = vmatpush1.msra.mxu0 0.0
        %1119 = vmatprep.subr.mxu0 0.0
        %1120 = vmatpush1.msra.mxu0 0.0
        %1121 = vmatprep.subr.mxu0 0.0
        %1122 = vmatpush1.msra.mxu0 0.0
        %1123 = vmatprep.subr.mxu0 0.0
        %1124 = vmatpush1.msra.mxu0 0.0
        %1125 = vmatprep.subr.mxu0 0.0
        %1126 = vmatpush1.msra.mxu0 0.0
        %1127 = vmatprep.subr.mxu0 0.0
        %1128 = vmatpush1.msra.mxu0 0.0
        %1129 = vmatprep.subr.mxu0 0.0
        %1130 = vmatpush1.msra.mxu0 0.0
        %1131 = vmatprep.subr.mxu0 0.0
        %1132 = vmatpush1.msra.mxu0 0.0
        %1133 = vmatprep.mubr.f32.mxu0 0.0
        %1134 = vmatmul.mubr.f32.gmra.mrb[0].mxu0 %v1062
        %v1135 = vpop.f32.mrb[0].mxu0
        %v1136 = vadd.f32 0.0, %v1135
        %v1137 = vpop.f32.mrb[0].mxu0
        %v1138 = vadd.f32 0.0, %v1137
        %1139 = vdwg.mxu0
        %1140 = vmatprep.subr.mxu0 0.0
        %1141 = vmatpush1.msra.mxu0 %v505
        %1142 = vmatprep.subr.mxu0 0.0
        %1143 = vmatpush1.msra.mxu0 %v508
        %1144 = vmatprep.subr.mxu0 0.0
        %1145 = vmatpush1.msra.mxu0 %v511
        %1146 = vmatprep.subr.mxu0 0.0
        %1147 = vmatpush1.msra.mxu0 %v514
        %1148 = vmatprep.subr.mxu0 0.0
        %1149 = vmatpush1.msra.mxu0 %v517
        %1150 = vmatprep.subr.mxu0 0.0
        %1151 = vmatpush1.msra.mxu0 %v520
        %1152 = vmatprep.subr.mxu0 0.0
        %1153 = vmatpush1.msra.mxu0 %v523
        %1154 = vmatprep.subr.mxu0 0.0
        %1155 = vmatpush1.msra.mxu0 %v526
        %1156 = vmatprep.subr.mxu0 0.0
        %1157 = vmatpush1.msra.mxu0 %v529
        %1158 = vmatprep.subr.mxu0 0.0
        %1159 = vmatpush1.msra.mxu0 %v532
        %1160 = vmatprep.subr.mxu0 0.0
        %1161 = vmatpush1.msra.mxu0 %v535
        %1162 = vmatprep.subr.mxu0 0.0
        %1163 = vmatpush1.msra.mxu0 %v538
        %1164 = vmatprep.subr.mxu0 0.0
        %1165 = vmatpush1.msra.mxu0 %v541
        %1166 = vmatprep.subr.mxu0 0.0
        %1167 = vmatpush1.msra.mxu0 %v544
        %1168 = vmatprep.subr.mxu0 0.0
        %1169 = vmatpush1.msra.mxu0 %v547
        %1170 = vmatprep.subr.mxu0 0.0
        %1171 = vmatpush1.msra.mxu0 %v550
        %1172 = vmatprep.subr.mxu0 0.0
        %1173 = vmatpush1.msra.mxu0 0.0
        %1174 = vmatprep.subr.mxu0 0.0
        %1175 = vmatpush1.msra.mxu0 0.0
        %1176 = vmatprep.subr.mxu0 0.0
        %1177 = vmatpush1.msra.mxu0 0.0
        %1178 = vmatprep.subr.mxu0 0.0
        %1179 = vmatpush1.msra.mxu0 0.0
        %1180 = vmatprep.subr.mxu0 0.0
        %1181 = vmatpush1.msra.mxu0 0.0
        %1182 = vmatprep.subr.mxu0 0.0
        %1183 = vmatpush1.msra.mxu0 0.0
        %1184 = vmatprep.subr.mxu0 0.0
        %1185 = vmatpush1.msra.mxu0 0.0
        %1186 = vmatprep.subr.mxu0 0.0
        %1187 = vmatpush1.msra.mxu0 0.0
        %1188 = vmatprep.subr.mxu0 0.0
        %1189 = vmatpush1.msra.mxu0 0.0
        %1190 = vmatprep.subr.mxu0 0.0
        %1191 = vmatpush1.msra.mxu0 0.0
        %1192 = vmatprep.subr.mxu0 0.0
        %1193 = vmatpush1.msra.mxu0 0.0
        %1194 = vmatprep.subr.mxu0 0.0
        %1195 = vmatpush1.msra.mxu0 0.0
        %1196 = vmatprep.subr.mxu0 0.0
        %1197 = vmatpush1.msra.mxu0 0.0
        %1198 = vmatprep.subr.mxu0 0.0
        %1199 = vmatpush1.msra.mxu0 0.0
        %1200 = vmatprep.subr.mxu0 0.0
        %1201 = vmatpush1.msra.mxu0 0.0
        %1202 = vmatprep.subr.mxu0 0.0
        %1203 = vmatpush1.msra.mxu0 0.0
        %1204 = vmatprep.mubr.f32.mxu0 0.0
        %1205 = vmatmul.mubr.f32.gmra.mrb[0].mxu0 %v1062
        %v1206 = vpop.f32.mrb[0].mxu0
        %v1207 = vadd.f32 0.0, %v1206
        %v1208 = vpop.f32.mrb[0].mxu0
        %1209 = vdwg.mxu0
        %v1210 = vadd.f32 %v1066, %v1136
        %v1211 = vxor.u32 %v1210, 2147483648
        %v1212 = vmul.f32 %v1211, 1.442695
        %v1213 = vpow.pop %v1212
        %v1214 = vadd.f32 %v1213, 1.0
        %v1215 = vrcp.pop %v1214
        %v1216 = vmul.f32 1.0, %v1215
        %v1217 = vadd.f32 %v1067, %v1138
        %v1218 = vxor.u32 %v1217, 2147483648
        %v1219 = vmul.f32 %v1218, 1.442695
        %v1220 = vpow.pop %v1219
        %v1221 = vadd.f32 %v1220, 1.0
        %v1222 = vrcp.pop %v1221
        %v1223 = vmul.f32 1.0, %v1222
        %v1224 = vadd.f32 %v1207, %v556
        %v1225 = vmul.f32 %v1216, %v1224
        %v1226 = vadd.f32 %v1068, %v1225
        %v1227 = vtanh.pop %v1226
        %v1228 = vsub.f32 %v1062, %v1227
        %v1229 = vmul.f32 %v1223, %v1228
        %v1230 = vadd.f32 %v1227, %v1229
        %1231 = vst [vmem:[#allocation2] sm:$0xff] %v1230
        %p1232 = scmp.eq.s32.totalorder %s25, 1
        // Predicated region
        $region49: #{tpu_custom_call.1} parent=39 // pred_check
          %p1233 = pneg %p1232
        $region50: #{tpu_custom_call.1} parent=39 // pred_check_branch
          %1235 = sbr.rel (%p1233) target = $region52
        $region51: #{tpu_custom_call.1} parent=39 // pred_region
          %v1236 = vld [vmem:[#allocation2] sm:$0xff]
          %1237 = vst [vmem:[%s255] sm:$0xff] %v1236
        $region52: #{tpu_custom_call.1} parent=39 // pred_fallthru
          _
        %s1238 = sand.u32 %s152, 1
        %s1239 = scalar_lea.sflag [#allocation6], %s1238
        %s1240 = sand.u32 %s152, 1
        %s1241 = smul.addr %s1240, 8
        %s1242 = scalar_lea.vmem [#allocation7], %s1241
        // Predicated region
        $region53: #{tpu_custom_call.1} parent=39 // pred_check
          %p1243 = pneg %p162
        $region54: #{tpu_custom_call.1} parent=39 // pred_check_branch
          %1245 = sbr.rel (%p1243) target = $region56
        $region55: #{tpu_custom_call.1} parent=39 // pred_region
          %s1247 = ssub.s32 128, 128
          %1248 = vsyncadd %s1239, %s1247
          %s1249 = smul.addr %s24, 128
          %s1250 = scalar_lea.hbm %s5, %s1249
          %s1252 = sshll.u32 %s1242, 4
          %s1253 = int_to_ptr.vmem [resolvable:$true] %s1252
          %1255 = dma.vmem_to_hbm [thread:$0]  %s1253, 128, %s1250, %s1239
        $region56: #{tpu_custom_call.1} parent=39 // pred_fallthru
          _
      $region40: #{tpu_custom_call.1} parent=5 // pred_fallthru
        _
      %p1256 = scmp.le.s32.totalorder 2, %s15
      // Predicated region
      $region57: #{tpu_custom_call.1} parent=5 // pred_check
        %p1257 = pneg %p1256
      $region58: #{tpu_custom_call.1} parent=5 // pred_check_branch
        %1259 = sbr.rel (%p1257) target = $region60
      $region59: #{tpu_custom_call.1} parent=5 // pred_region
        %s1260 = ssub.s32 %s15, 2
        // Predicated region
        $region61: #{tpu_custom_call.1} parent=59 // pred_check
          %p1261 = pneg %p168
        $region62: #{tpu_custom_call.1} parent=59 // pred_check_branch
          %1263 = sbr.rel (%p1261) target = $region64
        $region63: #{tpu_custom_call.1} parent=59 // pred_region
          %s1264 = sand.u32 %s153, 1
          %s1265 = scalar_lea.sflag [#allocation6], %s1264
          %s1266 = sand.u32 %s153, 1
          %s1267 = smul.addr %s1266, 8
          %s1268 = scalar_lea.vmem [#allocation7], %s1267
          %1269 = dma.done %s1265, 128
        $region64: #{tpu_custom_call.1} parent=59 // pred_fallthru
          _
      $region60: #{tpu_custom_call.1} parent=5 // pred_fallthru
        _
    $region6: #{tpu_custom_call.1} parent=1 // loop_footer
      %s19 = sadd.s32 1, %s15
    $region7: #{tpu_custom_call.1} parent=1 // loop_footer_branch
      %14 = sbr.rel target = $region3
    $region8: #{tpu_custom_call.1} parent=1 // loop_exit
      _
    %1270 = vsyncpa [#allocation5], 1
    %s1271 = scalar_lea.sflag [#allocation5], 1
    %1272 = vsyncpa %s1271, 1
    %1273 = vsyncpa [#allocation6], 1
    %s1274 = scalar_lea.sflag [#allocation6], 1
    %1275 = vsyncpa %s1274, 1

</llo_original>
